<compile_context>
chip_gen: v5e
topology: v5e:2x2
jax: 0.10.0
libtpu: 0.0.40
codegen_flags: <defaults>
</compile_context>

<pallas_src>
import functools

import jax
import jax.numpy as jnp
from jax import lax
from jax.experimental import pallas as pl
from jax.experimental.pallas import tpu as pltpu

_SQRT_HALF = 0.7071067811865476


def _gelu_exact(x):
    # PyTorch nn.GELU() default: 0.5 * x * (1 + erf(x / sqrt(2)))
    return 0.5 * x * (1.0 + lax.erf(x * _SQRT_HALF))


def _sigmoid(x):
    # sigmoid(x) == 0.5 * (tanh(x/2) + 1): no overflow for large |x| and the
    # transcendental goes to the EUP slot instead of a VALU divide.
    return 0.5 * (jnp.tanh(0.5 * x) + 1.0)


def transformer_layer_kernel(
    x_ref,       # (1, NB*C, L)  input block (only read on the first layer step)
    pos_ref,     # (NB*C, L)     positional embedding, tiled over NB
    ln0_g_ref,   # (1, C, 1)
    ln0_b_ref,   # (1, C, 1)
    wpa0_ref,    # (1, L, H)     = PA conv0.weight[:, :, 0].T
    wpa1_ref,    # (1, H, L)     = PA conv1.weight[:, :, 0].T
    wff0_ref,    # (1, NB*F, NB*C)  block-diagonal, ln1 gamma folded in
    bff0_ref,    # (1, NB*F, 1)     ln1 beta folded in
    wff1_ref,    # (1, NB*C, NB*F)  block-diagonal
    bff1_ref,    # (1, NB*C, 1)
    lnf_g_ref,   # (C, 1)
    lnf_b_ref,   # (C, 1)
    o_ref,       # (1, NB*C, L)
    carry_ref,   # (NB*C, L) f32 scratch: residual stream, resident across layers
    *,
    nb,
    eps,
):
    layer = pl.program_id(1)
    n_layers = pl.num_programs(1)
    M, L = carry_ref.shape          # M = NB * C
    C = M // nb

    def norm_c(v2d):
        # LayerNorm statistics over the channel axis; rows of the (NB*C, L)
        # slab are (n, c) n-major, so view as (nb, C, L) and reduce over C.
        v = v2d.reshape(nb, C, L)
        mu = jnp.mean(v, axis=1, keepdims=True)
        var = jnp.mean(jnp.square(v - mu), axis=1, keepdims=True)
        return (v - mu) * lax.rsqrt(var + eps)          # (nb, C, L)

    # --- PatchEmbed: seed the residual stream on the first layer step ---
    @pl.when(layer == 0)
    def _():
        carry_ref[...] = x_ref[0].astype(jnp.float32) + pos_ref[...]

    x = carry_ref[...]                                   # (M, L)

    # --- LayerNorm 0 (with affine) ---
    x1 = (norm_c(x) * ln0_g_ref[0][None] + ln0_b_ref[0][None]).reshape(M, L)

    # --- PixelAttention: 1x1 convs contracting over L; every (n, c) row is
    #     independent, so the whole batch block is one (NB*C, L) MXU slab. ---
    t = _gelu_exact(jnp.dot(x1, wpa0_ref[0], preferred_element_type=jnp.float32))
    gate = _sigmoid(jnp.dot(t, wpa1_ref[0], preferred_element_type=jnp.float32))
    x1 = x1 * gate + x                                   # gating + residual

    # --- LayerNorm 1 (affine folded into wff0/bff0 in the wrapper) ---
    x2 = norm_c(x1).reshape(M, L)

    # --- FeedForward: each projection is ONE 2-D MXU matmul against the
    #     per-block block-diagonal weights (no broadcast weight copies, no
    #     per-sequence tiny batched matmuls). ---
    h = _gelu_exact(
        jnp.dot(wff0_ref[0], x2, preferred_element_type=jnp.float32) + bff0_ref[0])
    y = jnp.dot(wff1_ref[0], h, preferred_element_type=jnp.float32) + bff1_ref[0]
    x_out = y + x1                                       # FF residual

    carry_ref[...] = x_out

    # --- final LayerNorm, stored once per batch block ---
    @pl.when(layer == n_layers - 1)
    def _():
        out = norm_c(x_out) * lnf_g_ref[...][None] + lnf_b_ref[...][None]
        o_ref[0] = out.reshape(M, L).astype(o_ref.dtype)


def _device_profile():
    """(vmem_limit_bytes or None, minimum #batch grid steps for TC parallelism)."""
    kind = ""
    try:
        kind = jax.devices()[0].device_kind.lower()
    except Exception:
        pass
    if "v7" in kind:                                       # 64 MiB VMEM, 2 TCs
        return 48 << 20, 2
    if "v6" in kind or "v5e" in kind or "v5 lite" in kind or "v5litepod" in kind:
        return 100 << 20, 1                                # 128 MiB VMEM, 1 TC
    if "v5" in kind or "v4" in kind:                       # v5p / v4 megacore
        return 100 << 20, 2
    return None, 1                                         # unknown: defaults


def _pick_block_nb(N, C, L, H, F, budget_bytes, min_steps):
    """Batch sequences per grid step: fill the MXU M dim / sublanes, stay in
    VMEM (counting streamed per-layer weights x2 for double buffering), keep
    enough grid steps for multi-TensorCore parts."""
    budget = int(0.7 * (budget_bytes if budget_bytes is not None else (24 << 20)))

    def vmem_need(nb):
        blk = 4 * nb * C * L                               # one f32 (NB*C, L) block
        w_layer = 4 * (2 * L * H + 2 * nb * nb * F * C + nb * (F + C) + 2 * C)
        live = 4 * nb * (5 * C * L + C * H + 2 * F * L)
        return 7 * blk + 2 * w_layer + live                # in/out/pos dbl-buf + carry

    feas = [d for d in range(1, N + 1) if N % d == 0 and vmem_need(d) <= budget]
    if not feas:
        return 1

    def rank(d):
        return ((N // d) >= min_steps,     # keep >=2 steps where 2 TCs exist
                d * C <= 1024,             # cap NB^2 growth of the FF weights
                (d * C) % 8 == 0,          # sublane-aligned (NB*C, L) slab
                d)                         # otherwise: as large as possible
    return max(feas, key=rank)


def transformer_forward(x_ncl, params, *, eps=1e-5, block_n=None):
    """x_ncl: (N, C, L) float32 -> (N, C, L). Inference-mode forward."""
    N, C, L = x_ncl.shape
    layers = params["layers"]
    n_layers = len(layers)
    F = layers[0]["wff0"].shape[0]
    H = layers[0]["wpa0"].shape[0]                         # = L // 2

    vmem_budget, min_steps = _device_profile()
    NB = block_n if block_n is not None else _pick_block_nb(
        N, C, L, H, F, vmem_budget, min_steps)
    assert N % NB == 0, (N, NB)
    G = N // NB
    M = NB * C

    def block_diag(w):
        a, b = w.shape
        eye = jnp.eye(NB, dtype=w.dtype)
        return (eye[:, None, :, None] * w[None, :, None, :]).reshape(NB * a, NB * b)

    # ---- parameter prep (wrapper glue; runs once, not the hot path) ----
    pos = jnp.tile(params["pos"].reshape(C, L), (NB, 1))                  # (M, L)
    ln0_g = jnp.stack([p["ln0_g"] for p in layers]).reshape(n_layers, C, 1)
    ln0_b = jnp.stack([p["ln0_b"] for p in layers]).reshape(n_layers, C, 1)
    wpa0 = jnp.stack([p["wpa0"].T for p in layers])                       # (Lyr, L, H)
    wpa1 = jnp.stack([p["wpa1"].T for p in layers])                       # (Lyr, H, L)
    # Fold ln1's affine into the first FF linear (exact) and expand the FF
    # weights into per-block block-diagonal form -> single 2-D matmuls.
    wff0 = jnp.stack([block_diag(p["wff0"] * p["ln1_g"][None, :]) for p in layers])
    bff0 = jnp.stack([jnp.tile((p["wff0"] @ p["ln1_b"] + p["bff0"]).reshape(F, 1),
                               (NB, 1)) for p in layers])                 # (Lyr, NB*F, 1)
    wff1 = jnp.stack([block_diag(p["wff1"]) for p in layers])             # (Lyr, NB*C, NB*F)
    bff1 = jnp.stack([jnp.tile(p["bff1"].reshape(C, 1), (NB, 1)) for p in layers])
    lnf_g = params["lnf_g"].reshape(C, 1)
    lnf_b = params["lnf_b"].reshape(C, 1)

    # (N, C, L) -> (G, NB*C, L): pure reshape (rows n-major, no transpose).
    x2d = x_ncl.reshape(G, M, L)

    kern = functools.partial(transformer_layer_kernel, nb=NB, eps=eps)
    io_map = lambda g, l: (g, 0, 0)
    lay_map = lambda g, l: (l, 0, 0)
    const2 = lambda g, l: (0, 0)

    cp_kwargs = dict(dimension_semantics=("parallel", "arbitrary"))
    if vmem_budget is not None:
        cp_kwargs["vmem_limit_bytes"] = int(vmem_budget)

    out2d = pl.pallas_call(
        kern,
        out_shape=jax.ShapeDtypeStruct((G, M, L), x_ncl.dtype),
        grid=(G, n_layers),
        in_specs=[
            pl.BlockSpec((1, M, L), io_map),
            pl.BlockSpec((M, L), const2),
            pl.BlockSpec((1, C, 1), lay_map),
            pl.BlockSpec((1, C, 1), lay_map),
            pl.BlockSpec((1, L, H), lay_map),
            pl.BlockSpec((1, H, L), lay_map),
            pl.BlockSpec((1, NB * F, NB * C), lay_map),
            pl.BlockSpec((1, NB * F, 1), lay_map),
            pl.BlockSpec((1, NB * C, NB * F), lay_map),
            pl.BlockSpec((1, NB * C, 1), lay_map),
            pl.BlockSpec((C, 1), const2),
            pl.BlockSpec((C, 1), const2),
        ],
        out_specs=pl.BlockSpec((1, M, L), io_map),
        scratch_shapes=[pltpu.VMEM((M, L), jnp.float32)],
        compiler_params=pltpu.CompilerParams(**cp_kwargs),
    )(x2d, pos, ln0_g, ln0_b, wpa0, wpa1, wff0, bff0, wff1, bff1, lnf_g, lnf_b)

    return out2d.reshape(N, C, L)


def ref_forward(x_ncl, params, eps=1e-5):
    """Pure-JAX reference matching the PyTorch eval-mode forward."""
    def ln(v, g, b):
        mu = jnp.mean(v, axis=-1, keepdims=True)
        var = jnp.mean(jnp.square(v - mu), axis=-1, keepdims=True)
        return (v - mu) / jnp.sqrt(var + eps) * g + b

    x = x_ncl + params["pos"]                              # PatchEmbed
    for p in params["layers"]:
        xp = jnp.transpose(x, (0, 2, 1))                   # (N, L, C)
        x1 = ln(xp, p["ln0_g"], p["ln0_b"])
        # PixelAttention: 1x1 convs over the seq-len "channel" axis.
        t = _gelu_exact(jnp.einsum("hl,nlc->nhc", p["wpa0"], x1))
        gate = jax.nn.sigmoid(jnp.einsum("lh,nhc->nlc", p["wpa1"], t))
        x1 = x1 * gate + xp
        x2 = ln(x1, p["ln1_g"], p["ln1_b"])
        h = _gelu_exact(x2 @ p["wff0"].T + p["bff0"])
        x2 = h @ p["wff1"].T + p["bff1"] + x1
        x = jnp.transpose(x2, (0, 2, 1))
    xp = jnp.transpose(x, (0, 2, 1))
    out = ln(xp, params["lnf_g"], params["lnf_b"])
    return jnp.transpose(out, (0, 2, 1))


if __name__ == "__main__":
    # Small shapes consistent with the module: (N, C=io_channels, L=seq_len).
    N, C, L = 2, 4, 16
    F = 32                  # feedforward_dim
    NUM_LAYERS = 2
    # Dropout is identity at inference.

    key = jax.random.PRNGKey(0)

    def nrm(k, shape, s=0.2):
        return s * jax.random.normal(k, shape, jnp.float32)

    key, kp = jax.random.split(key)
    layers = []
    for _ in range(NUM_LAYERS):
        key, *ks = jax.random.split(key, 11)
        layers.append({
            "ln0_g": 1.0 + nrm(ks[0], (C,), 0.1),
            "ln0_b": nrm(ks[1], (C,), 0.1),
            "wpa0": nrm(ks[2], (L // 2, L)),   # Conv1d(L, L//2, 1, bias=False).weight[:, :, 0]
            "wpa1": nrm(ks[3], (L, L // 2)),   # Conv1d(L//2, L, 1, bias=False).weight[:, :, 0]
            "ln1_g": 1.0 + nrm(ks[4], (C,), 0.1),
            "ln1_b": nrm(ks[5], (C,), 0.1),
            "wff0": nrm(ks[6], (F, C)),        # Linear(C, F).weight
            "bff0": nrm(ks[7], (F,), 0.1),
            "wff1": nrm(ks[8], (C, F)),        # Linear(F, C).weight
            "bff1": nrm(ks[9], (C,), 0.1),
        })
    key, kg, kb, kx = jax.random.split(key, 4)
    params = {
        "pos": 0.02 * jax.random.normal(kp, (1, C, L), jnp.float32),
        "layers": layers,
        "lnf_g": 1.0 + nrm(kg, (C,), 0.1),
        "lnf_b": nrm(kb, (C,), 0.1),
    }

    x = jax.random.normal(kx, (N, C, L), jnp.float32)

    out = jax.block_until_ready(transformer_forward(x, params))
    ref = jax.block_until_ready(ref_forward(x, params))

    assert out.shape == (N, C, L)
    max_err = float(jnp.max(jnp.abs(out - ref)))
    assert jnp.allclose(out, ref, atol=1e-3, rtol=1e-3), max_err

    print("KERNEL_OK")
</pallas_src>

<mosaic_0001>
module attributes {stable_mosaic.version = 11 : i64} {
  func.func @transformer_layer_kernel(%arg0: i32, %arg1: i32, %arg2: memref<1x8x16xf32, #tpu.memory_space<vmem>>, %arg3: memref<8x16xf32, #tpu.memory_space<vmem>>, %arg4: memref<1x4x1xf32, #tpu.memory_space<vmem>>, %arg5: memref<1x4x1xf32, #tpu.memory_space<vmem>>, %arg6: memref<1x16x8xf32, #tpu.memory_space<vmem>>, %arg7: memref<1x8x16xf32, #tpu.memory_space<vmem>>, %arg8: memref<1x64x8xf32, #tpu.memory_space<vmem>>, %arg9: memref<1x64x1xf32, #tpu.memory_space<vmem>>, %arg10: memref<1x8x64xf32, #tpu.memory_space<vmem>>, %arg11: memref<1x8x1xf32, #tpu.memory_space<vmem>>, %arg12: memref<4x1xf32, #tpu.memory_space<vmem>>, %arg13: memref<4x1xf32, #tpu.memory_space<vmem>>, %arg14: memref<1x8x16xf32, #tpu.memory_space<vmem>>, %arg15: memref<8x16xf32, #tpu.memory_space<vmem>>) attributes {dimension_semantics = [#tpu.dimension_semantics<parallel>, #tpu.dimension_semantics<arbitrary>], iteration_bounds = array<i64: 1, 2>, scalar_prefetch = 0 : i64, scratch_operands = 1 : i64, tpu.core_type = #tpu.core_type<tc>, window_params = [{transform_indices = @transform_0, window_bounds = array<i64: 1, 8, 16>}, {pipeline_mode = #tpu.pipeline_mode<synchronous>, transform_indices = @transform_1, window_bounds = array<i64: 8, 16>}, {transform_indices = @transform_2, window_bounds = array<i64: 1, 4, 1>}, {transform_indices = @transform_3, window_bounds = array<i64: 1, 4, 1>}, {transform_indices = @transform_4, window_bounds = array<i64: 1, 16, 8>}, {transform_indices = @transform_5, window_bounds = array<i64: 1, 8, 16>}, {transform_indices = @transform_6, window_bounds = array<i64: 1, 64, 8>}, {transform_indices = @transform_7, window_bounds = array<i64: 1, 64, 1>}, {transform_indices = @transform_8, window_bounds = array<i64: 1, 8, 64>}, {transform_indices = @transform_9, window_bounds = array<i64: 1, 8, 1>}, {pipeline_mode = #tpu.pipeline_mode<synchronous>, transform_indices = @transform_10, window_bounds = array<i64: 4, 1>}, {pipeline_mode = #tpu.pipeline_mode<synchronous>, transform_indices = @transform_11, window_bounds = array<i64: 4, 1>}, {transform_indices = @transform_12, window_bounds = array<i64: 1, 8, 16>}]} {
    %c0_i32 = arith.constant 0 : i32
    %0 = arith.cmpi eq, %arg1, %c0_i32 : i32
    %1 = arith.extui %0 : i1 to i32
    %c0_i32_0 = arith.constant 0 : i32
    %2 = arith.cmpi ne, %1, %c0_i32_0 : i32
    scf.if %2 {
      %c0_51 = arith.constant 0 : index
      %c0_52 = arith.constant 0 : index
      %c0_53 = arith.constant 0 : index
      %104 = vector.load %arg2[%c0_51, %c0_52, %c0_53] : memref<1x8x16xf32, #tpu.memory_space<vmem>>, vector<1x8x16xf32>
      %105 = vector.shape_cast %104 : vector<1x8x16xf32> to vector<8x16xf32>
      %c0_54 = arith.constant 0 : index
      %c0_55 = arith.constant 0 : index
      %106 = vector.load %arg3[%c0_54, %c0_55] : memref<8x16xf32, #tpu.memory_space<vmem>>, vector<8x16xf32>
      %107 = arith.addf %105, %106 : vector<8x16xf32>
      %c0_56 = arith.constant 0 : index
      %c0_57 = arith.constant 0 : index
      %108 = vector.load %arg15[%c0_56, %c0_57] : memref<8x16xf32, #tpu.memory_space<vmem>>, vector<8x16xf32>
      tpu.vector_store %arg15[%c0_56, %c0_57], %107 {strides = array<i32>} : memref<8x16xf32, #tpu.memory_space<vmem>>, vector<8x16xf32>,
    } else {
    }
    %c0 = arith.constant 0 : index
    %c0_1 = arith.constant 0 : index
    %3 = vector.load %arg15[%c0, %c0_1] : memref<8x16xf32, #tpu.memory_space<vmem>>, vector<8x16xf32>
    %4 = vector.shape_cast %3 : vector<8x16xf32> to vector<2x4x16xf32>
    %cst = arith.constant dense<0.000000e+00> : vector<2x16xf32>
    %5 = vector.multi_reduction <add>, %4, %cst [1] : vector<2x4x16xf32> to vector<2x16xf32>
    %6 = vector.shape_cast %5 : vector<2x16xf32> to vector<2x1x16xf32>
    %cst_2 = arith.constant 4.000000e+00 : f32
    %7 = vector.broadcast %cst_2 : f32 to vector<2x1x16xf32>
    %8 = arith.divf %6, %7 : vector<2x1x16xf32>
    %9 = vector.broadcast %8 : vector<2x1x16xf32> to vector<2x4x16xf32>
    %10 = arith.subf %4, %9 : vector<2x4x16xf32>
    %11 = arith.mulf %10, %10 : vector<2x4x16xf32>
    %cst_3 = arith.constant dense<0.000000e+00> : vector<2x16xf32>
    %12 = vector.multi_reduction <add>, %11, %cst_3 [1] : vector<2x4x16xf32> to vector<2x16xf32>
    %13 = vector.shape_cast %12 : vector<2x16xf32> to vector<2x1x16xf32>
    %cst_4 = arith.constant 4.000000e+00 : f32
    %14 = vector.broadcast %cst_4 : f32 to vector<2x1x16xf32>
    %15 = arith.divf %13, %14 : vector<2x1x16xf32>
    %16 = vector.broadcast %8 : vector<2x1x16xf32> to vector<2x4x16xf32>
    %17 = arith.subf %4, %16 : vector<2x4x16xf32>
    %cst_5 = arith.constant 9.99999974E-6 : f32
    %18 = vector.broadcast %cst_5 : f32 to vector<2x1x16xf32>
    %19 = arith.addf %15, %18 : vector<2x1x16xf32>
    %20 = math.rsqrt %19 : vector<2x1x16xf32>
    %21 = vector.broadcast %20 : vector<2x1x16xf32> to vector<2x4x16xf32>
    %22 = arith.mulf %17, %21 : vector<2x4x16xf32>
    %c0_6 = arith.constant 0 : index
    %c0_7 = arith.constant 0 : index
    %c0_8 = arith.constant 0 : index
    %23 = vector.load %arg4[%c0_6, %c0_7, %c0_8] : memref<1x4x1xf32, #tpu.memory_space<vmem>>, vector<1x4x1xf32>
    %24 = vector.shape_cast %23 : vector<1x4x1xf32> to vector<4x1xf32>
    %25 = vector.shape_cast %24 : vector<4x1xf32> to vector<1x4x1xf32>
    %26 = vector.broadcast %25 : vector<1x4x1xf32> to vector<2x4x16xf32>
    %27 = arith.mulf %22, %26 : vector<2x4x16xf32>
    %c0_9 = arith.constant 0 : index
    %c0_10 = arith.constant 0 : index
    %c0_11 = arith.constant 0 : index
    %28 = vector.load %arg5[%c0_9, %c0_10, %c0_11] : memref<1x4x1xf32, #tpu.memory_space<vmem>>, vector<1x4x1xf32>
    %29 = vector.shape_cast %28 : vector<1x4x1xf32> to vector<4x1xf32>
    %30 = vector.shape_cast %29 : vector<4x1xf32> to vector<1x4x1xf32>
    %31 = vector.broadcast %30 : vector<1x4x1xf32> to vector<2x4x16xf32>
    %32 = arith.addf %27, %31 : vector<2x4x16xf32>
    %33 = vector.shape_cast %32 : vector<2x4x16xf32> to vector<8x16xf32>
    %c0_12 = arith.constant 0 : index
    %c0_13 = arith.constant 0 : index
    %c0_14 = arith.constant 0 : index
    %34 = vector.load %arg6[%c0_12, %c0_13, %c0_14] : memref<1x16x8xf32, #tpu.memory_space<vmem>>, vector<1x16x8xf32>
    %35 = vector.shape_cast %34 : vector<1x16x8xf32> to vector<16x8xf32>
    %cst_15 = arith.constant dense<0.000000e+00> : vector<8x8xf32>
    %36 = tpu.matmul %33, %35, %cst_15 {dimension_numbers = #tpu.dot_dimension_numbers<[1], [0], [0], [1], [0, 0, 1, 1], [], []>} : vector<8x16xf32>, vector<16x8xf32>, vector<8x8xf32> -> vector<8x8xf32>
    %cst_16 = arith.constant 5.000000e-01 : f32
    %37 = vector.broadcast %cst_16 : f32 to vector<8x8xf32>
    %38 = arith.mulf %37, %36 : vector<8x8xf32>
    %cst_17 = arith.constant 0.707106769 : f32
    %39 = vector.broadcast %cst_17 : f32 to vector<8x8xf32>
    %40 = arith.mulf %36, %39 : vector<8x8xf32>
    %41 = math.erf %40 : vector<8x8xf32>
    %cst_18 = arith.constant 1.000000e+00 : f32
    %42 = vector.broadcast %cst_18 : f32 to vector<8x8xf32>
    %43 = arith.addf %42, %41 : vector<8x8xf32>
    %44 = arith.mulf %38, %43 : vector<8x8xf32>
    %c0_19 = arith.constant 0 : index
    %c0_20 = arith.constant 0 : index
    %c0_21 = arith.constant 0 : index
    %45 = vector.load %arg7[%c0_19, %c0_20, %c0_21] : memref<1x8x16xf32, #tpu.memory_space<vmem>>, vector<1x8x16xf32>
    %46 = vector.shape_cast %45 : vector<1x8x16xf32> to vector<8x16xf32>
    %cst_22 = arith.constant dense<0.000000e+00> : vector<8x16xf32>
    %47 = tpu.matmul %44, %46, %cst_22 {dimension_numbers = #tpu.dot_dimension_numbers<[1], [0], [0], [1], [0, 0, 1, 1], [], []>} : vector<8x8xf32>, vector<8x16xf32>, vector<8x16xf32> -> vector<8x16xf32>
    %cst_23 = arith.constant 5.000000e-01 : f32
    %48 = vector.broadcast %cst_23 : f32 to vector<8x16xf32>
    %49 = arith.mulf %48, %47 : vector<8x16xf32>
    %50 = math.tanh %49 : vector<8x16xf32>
    %cst_24 = arith.constant 1.000000e+00 : f32
    %51 = vector.broadcast %cst_24 : f32 to vector<8x16xf32>
    %52 = arith.addf %50, %51 : vector<8x16xf32>
    %cst_25 = arith.constant 5.000000e-01 : f32
    %53 = vector.broadcast %cst_25 : f32 to vector<8x16xf32>
    %54 = arith.mulf %53, %52 : vector<8x16xf32>
    %55 = arith.mulf %33, %54 : vector<8x16xf32>
    %56 = arith.addf %55, %3 : vector<8x16xf32>
    %57 = vector.shape_cast %56 : vector<8x16xf32> to vector<2x4x16xf32>
    %cst_26 = arith.constant dense<0.000000e+00> : vector<2x16xf32>
    %58 = vector.multi_reduction <add>, %57, %cst_26 [1] : vector<2x4x16xf32> to vector<2x16xf32>
    %59 = vector.shape_cast %58 : vector<2x16xf32> to vector<2x1x16xf32>
    %cst_27 = arith.constant 4.000000e+00 : f32
    %60 = vector.broadcast %cst_27 : f32 to vector<2x1x16xf32>
    %61 = arith.divf %59, %60 : vector<2x1x16xf32>
    %62 = vector.broadcast %61 : vector<2x1x16xf32> to vector<2x4x16xf32>
    %63 = arith.subf %57, %62 : vector<2x4x16xf32>
    %64 = arith.mulf %63, %63 : vector<2x4x16xf32>
    %cst_28 = arith.constant dense<0.000000e+00> : vector<2x16xf32>
    %65 = vector.multi_reduction <add>, %64, %cst_28 [1] : vector<2x4x16xf32> to vector<2x16xf32>
    %66 = vector.shape_cast %65 : vector<2x16xf32> to vector<2x1x16xf32>
    %cst_29 = arith.constant 4.000000e+00 : f32
    %67 = vector.broadcast %cst_29 : f32 to vector<2x1x16xf32>
    %68 = arith.divf %66, %67 : vector<2x1x16xf32>
    %69 = vector.broadcast %61 : vector<2x1x16xf32> to vector<2x4x16xf32>
    %70 = arith.subf %57, %69 : vector<2x4x16xf32>
    %cst_30 = arith.constant 9.99999974E-6 : f32
    %71 = vector.broadcast %cst_30 : f32 to vector<2x1x16xf32>
    %72 = arith.addf %68, %71 : vector<2x1x16xf32>
    %73 = math.rsqrt %72 : vector<2x1x16xf32>
    %74 = vector.broadcast %73 : vector<2x1x16xf32> to vector<2x4x16xf32>
    %75 = arith.mulf %70, %74 : vector<2x4x16xf32>
    %76 = vector.shape_cast %75 : vector<2x4x16xf32> to vector<8x16xf32>
    %c0_31 = arith.constant 0 : index
    %c0_32 = arith.constant 0 : index
    %c0_33 = arith.constant 0 : index
    %77 = vector.load %arg8[%c0_31, %c0_32, %c0_33] : memref<1x64x8xf32, #tpu.memory_space<vmem>>, vector<1x64x8xf32>
    %78 = vector.shape_cast %77 : vector<1x64x8xf32> to vector<64x8xf32>
    %cst_34 = arith.constant dense<0.000000e+00> : vector<64x16xf32>
    %79 = tpu.matmul %78, %76, %cst_34 {dimension_numbers = #tpu.dot_dimension_numbers<[1], [0], [0], [1], [0, 0, 1, 1], [], []>} : vector<64x8xf32>, vector<8x16xf32>, vector<64x16xf32> -> vector<64x16xf32>
    %c0_35 = arith.constant 0 : index
    %c0_36 = arith.constant 0 : index
    %c0_37 = arith.constant 0 : index
    %80 = vector.load %arg9[%c0_35, %c0_36, %c0_37] : memref<1x64x1xf32, #tpu.memory_space<vmem>>, vector<1x64x1xf32>
    %81 = vector.shape_cast %80 : vector<1x64x1xf32> to vector<64x1xf32>
    %82 = vector.broadcast %81 : vector<64x1xf32> to vector<64x16xf32>
    %83 = arith.addf %79, %82 : vector<64x16xf32>
    %cst_38 = arith.constant 5.000000e-01 : f32
    %84 = vector.broadcast %cst_38 : f32 to vector<64x16xf32>
    %85 = arith.mulf %84, %83 : vector<64x16xf32>
    %cst_39 = arith.constant 0.707106769 : f32
    %86 = vector.broadcast %cst_39 : f32 to vector<64x16xf32>
    %87 = arith.mulf %83, %86 : vector<64x16xf32>
    %88 = math.erf %87 : vector<64x16xf32>
    %cst_40 = arith.constant 1.000000e+00 : f32
    %89 = vector.broadcast %cst_40 : f32 to vector<64x16xf32>
    %90 = arith.addf %89, %88 : vector<64x16xf32>
    %91 = arith.mulf %85, %90 : vector<64x16xf32>
    %c0_41 = arith.constant 0 : index
    %c0_42 = arith.constant 0 : index
    %c0_43 = arith.constant 0 : index
    %92 = vector.load %arg10[%c0_41, %c0_42, %c0_43] : memref<1x8x64xf32, #tpu.memory_space<vmem>>, vector<1x8x64xf32>
    %93 = vector.shape_cast %92 : vector<1x8x64xf32> to vector<8x64xf32>
    %cst_44 = arith.constant dense<0.000000e+00> : vector<8x16xf32>
    %94 = tpu.matmul %93, %91, %cst_44 {dimension_numbers = #tpu.dot_dimension_numbers<[1], [0], [0], [1], [0, 0, 1, 1], [], []>} : vector<8x64xf32>, vector<64x16xf32>, vector<8x16xf32> -> vector<8x16xf32>
    %c0_45 = arith.constant 0 : index
    %c0_46 = arith.constant 0 : index
    %c0_47 = arith.constant 0 : index
    %95 = vector.load %arg11[%c0_45, %c0_46, %c0_47] : memref<1x8x1xf32, #tpu.memory_space<vmem>>, vector<1x8x1xf32>
    %96 = vector.shape_cast %95 : vector<1x8x1xf32> to vector<8x1xf32>
    %97 = vector.broadcast %96 : vector<8x1xf32> to vector<8x16xf32>
    %98 = arith.addf %94, %97 : vector<8x16xf32>
    %99 = arith.addf %98, %56 : vector<8x16xf32>
    %c0_48 = arith.constant 0 : index
    %c0_49 = arith.constant 0 : index
    %100 = vector.load %arg15[%c0_48, %c0_49] : memref<8x16xf32, #tpu.memory_space<vmem>>, vector<8x16xf32>
    tpu.vector_store %arg15[%c0_48, %c0_49], %99 {strides = array<i32>} : memref<8x16xf32, #tpu.memory_space<vmem>>, vector<8x16xf32>,
    %c1_i32 = arith.constant 1 : i32
    %101 = arith.cmpi eq, %arg1, %c1_i32 : i32
    %102 = arith.extui %101 : i1 to i32
    %c0_i32_50 = arith.constant 0 : i32
    %103 = arith.cmpi ne, %102, %c0_i32_50 : i32
    scf.if %103 {
      %104 = vector.shape_cast %99 : vector<8x16xf32> to vector<2x4x16xf32>
      %cst_51 = arith.constant dense<0.000000e+00> : vector<2x16xf32>
      %105 = vector.multi_reduction <add>, %104, %cst_51 [1] : vector<2x4x16xf32> to vector<2x16xf32>
      %106 = vector.shape_cast %105 : vector<2x16xf32> to vector<2x1x16xf32>
      %cst_52 = arith.constant 4.000000e+00 : f32
      %107 = vector.broadcast %cst_52 : f32 to vector<2x1x16xf32>
      %108 = arith.divf %106, %107 : vector<2x1x16xf32>
      %109 = vector.broadcast %108 : vector<2x1x16xf32> to vector<2x4x16xf32>
      %110 = arith.subf %104, %109 : vector<2x4x16xf32>
      %111 = arith.mulf %110, %110 : vector<2x4x16xf32>
      %cst_53 = arith.constant dense<0.000000e+00> : vector<2x16xf32>
      %112 = vector.multi_reduction <add>, %111, %cst_53 [1] : vector<2x4x16xf32> to vector<2x16xf32>
      %113 = vector.shape_cast %112 : vector<2x16xf32> to vector<2x1x16xf32>
      %cst_54 = arith.constant 4.000000e+00 : f32
      %114 = vector.broadcast %cst_54 : f32 to vector<2x1x16xf32>
      %115 = arith.divf %113, %114 : vector<2x1x16xf32>
      %116 = vector.broadcast %108 : vector<2x1x16xf32> to vector<2x4x16xf32>
      %117 = arith.subf %104, %116 : vector<2x4x16xf32>
      %cst_55 = arith.constant 9.99999974E-6 : f32
      %118 = vector.broadcast %cst_55 : f32 to vector<2x1x16xf32>
      %119 = arith.addf %115, %118 : vector<2x1x16xf32>
      %120 = math.rsqrt %119 : vector<2x1x16xf32>
      %121 = vector.broadcast %120 : vector<2x1x16xf32> to vector<2x4x16xf32>
      %122 = arith.mulf %117, %121 : vector<2x4x16xf32>
      %c0_56 = arith.constant 0 : index
      %c0_57 = arith.constant 0 : index
      %123 = vector.load %arg12[%c0_56, %c0_57] : memref<4x1xf32, #tpu.memory_space<vmem>>, vector<4x1xf32>
      %124 = vector.shape_cast %123 : vector<4x1xf32> to vector<1x4x1xf32>
      %125 = vector.broadcast %124 : vector<1x4x1xf32> to vector<2x4x16xf32>
      %126 = arith.mulf %122, %125 : vector<2x4x16xf32>
      %c0_58 = arith.constant 0 : index
      %c0_59 = arith.constant 0 : index
      %127 = vector.load %arg13[%c0_58, %c0_59] : memref<4x1xf32, #tpu.memory_space<vmem>>, vector<4x1xf32>
      %128 = vector.shape_cast %127 : vector<4x1xf32> to vector<1x4x1xf32>
      %129 = vector.broadcast %128 : vector<1x4x1xf32> to vector<2x4x16xf32>
      %130 = arith.addf %126, %129 : vector<2x4x16xf32>
      %131 = vector.shape_cast %130 : vector<2x4x16xf32> to vector<8x16xf32>
      %c0_60 = arith.constant 0 : index
      %c0_61 = arith.constant 0 : index
      %c0_62 = arith.constant 0 : index
      %132 = vector.load %arg14[%c0_60, %c0_61, %c0_62] : memref<1x8x16xf32, #tpu.memory_space<vmem>>, vector<1x8x16xf32>
      %133 = vector.shape_cast %132 : vector<1x8x16xf32> to vector<8x16xf32>
      %134 = vector.shape_cast %131 : vector<8x16xf32> to vector<1x8x16xf32>
      tpu.vector_store %arg14[%c0_60, %c0_61, %c0_62], %134 {strides = array<i32>} : memref<1x8x16xf32, #tpu.memory_space<vmem>>, vector<1x8x16xf32>,
    } else {
    }
    return
  }
  func.func @transform_0(%arg0: i32, %arg1: i32) -> (i32, i32, i32) {
    %c0_i32 = arith.constant 0 : i32
    %c0_i32_0 = arith.constant 0 : i32
    %c0_i32_1 = arith.constant 0 : i32
    return %arg0, %c0_i32, %c0_i32_0 : i32, i32, i32
  }
  func.func @transform_1(%arg0: i32, %arg1: i32) -> (i32, i32) {
    %c0_i32 = arith.constant 0 : i32
    %c0_i32_0 = arith.constant 0 : i32
    %c0_i32_1 = arith.constant 0 : i32
    return %c0_i32, %c0_i32_0 : i32, i32
  }
  func.func @transform_2(%arg0: i32, %arg1: i32) -> (i32, i32, i32) {
    %c0_i32 = arith.constant 0 : i32
    %c0_i32_0 = arith.constant 0 : i32
    %c0_i32_1 = arith.constant 0 : i32
    return %arg1, %c0_i32, %c0_i32_0 : i32, i32, i32
  }
  func.func @transform_3(%arg0: i32, %arg1: i32) -> (i32, i32, i32) {
    %c0_i32 = arith.constant 0 : i32
    %c0_i32_0 = arith.constant 0 : i32
    %c0_i32_1 = arith.constant 0 : i32
    return %arg1, %c0_i32, %c0_i32_0 : i32, i32, i32
  }
  func.func @transform_4(%arg0: i32, %arg1: i32) -> (i32, i32, i32) {
    %c0_i32 = arith.constant 0 : i32
    %c0_i32_0 = arith.constant 0 : i32
    %c0_i32_1 = arith.constant 0 : i32
    return %arg1, %c0_i32, %c0_i32_0 : i32, i32, i32
  }
  func.func @transform_5(%arg0: i32, %arg1: i32) -> (i32, i32, i32) {
    %c0_i32 = arith.constant 0 : i32
    %c0_i32_0 = arith.constant 0 : i32
    %c0_i32_1 = arith.constant 0 : i32
    return %arg1, %c0_i32, %c0_i32_0 : i32, i32, i32
  }
  func.func @transform_6(%arg0: i32, %arg1: i32) -> (i32, i32, i32) {
    %c0_i32 = arith.constant 0 : i32
    %c0_i32_0 = arith.constant 0 : i32
    %c0_i32_1 = arith.constant 0 : i32
    return %arg1, %c0_i32, %c0_i32_0 : i32, i32, i32
  }
  func.func @transform_7(%arg0: i32, %arg1: i32) -> (i32, i32, i32) {
    %c0_i32 = arith.constant 0 : i32
    %c0_i32_0 = arith.constant 0 : i32
    %c0_i32_1 = arith.constant 0 : i32
    return %arg1, %c0_i32, %c0_i32_0 : i32, i32, i32
  }
  func.func @transform_8(%arg0: i32, %arg1: i32) -> (i32, i32, i32) {
    %c0_i32 = arith.constant 0 : i32
    %c0_i32_0 = arith.constant 0 : i32
    %c0_i32_1 = arith.constant 0 : i32
    return %arg1, %c0_i32, %c0_i32_0 : i32, i32, i32
  }
  func.func @transform_9(%arg0: i32, %arg1: i32) -> (i32, i32, i32) {
    %c0_i32 = arith.constant 0 : i32
    %c0_i32_0 = arith.constant 0 : i32
    %c0_i32_1 = arith.constant 0 : i32
    return %arg1, %c0_i32, %c0_i32_0 : i32, i32, i32
  }
  func.func @transform_10(%arg0: i32, %arg1: i32) -> (i32, i32) {
    %c0_i32 = arith.constant 0 : i32
    %c0_i32_0 = arith.constant 0 : i32
    %c0_i32_1 = arith.constant 0 : i32
    return %c0_i32, %c0_i32_0 : i32, i32
  }
  func.func @transform_11(%arg0: i32, %arg1: i32) -> (i32, i32) {
    %c0_i32 = arith.constant 0 : i32
    %c0_i32_0 = arith.constant 0 : i32
    %c0_i32_1 = arith.constant 0 : i32
    return %c0_i32, %c0_i32_0 : i32, i32
  }
  func.func @transform_12(%arg0: i32, %arg1: i32) -> (i32, i32, i32) {
    %c0_i32 = arith.constant 0 : i32
    %c0_i32_0 = arith.constant 0 : i32
    %c0_i32_1 = arith.constant 0 : i32
    return %arg0, %c0_i32, %c0_i32_0 : i32, i32, i32
  }
}

</mosaic_0001>

<llo_original>
// kernel: tpu_custom_call.1
$region0: #{tpu_custom_call.1}
  #allocation0 [shape = 'u32[]', space=smem, size = 0x4, offset = 0x4, fixed_abs, tag = 'smem constant byte address 0x4 - core index']
  #allocation1 [shape = 'u32[72,128]{1,0:T(1,128)}', space=vmem, size = 0x9000, scoped, tag = 'internal scratch']
  #allocation2 [shape = 'f32[8,16]{1,0:T(8,128)}', space=vmem, size = 0x1000, scoped, tag = 'scratch operand']
  %s0 = inlined_call_operand.vmem [shape: f32[1,8,16], index: 0, kind: input, shape index: {}]
  %s1 = inlined_call_operand.vmem [shape: f32[8,16], index: 1, kind: input, shape index: {}]
  %s2 = inlined_call_operand.vmem [shape: f32[2,4,1], index: 2, kind: input, shape index: {}]
  %s3 = inlined_call_operand.vmem [shape: f32[2,4,1], index: 3, kind: input, shape index: {}]
  %s4 = inlined_call_operand.vmem [shape: f32[2,16,8], index: 4, kind: input, shape index: {}]
  %s5 = inlined_call_operand.vmem [shape: f32[2,8,16], index: 5, kind: input, shape index: {}]
  %s6 = inlined_call_operand.vmem [shape: f32[2,64,8], index: 6, kind: input, shape index: {}]
  %s7 = inlined_call_operand.vmem [shape: f32[2,64,1], index: 7, kind: input, shape index: {}]
  %s8 = inlined_call_operand.vmem [shape: f32[2,8,64], index: 8, kind: input, shape index: {}]
  %s9 = inlined_call_operand.vmem [shape: f32[2,8,1], index: 9, kind: input, shape index: {}]
  %s10 = inlined_call_operand.vmem [shape: f32[4,1], index: 10, kind: input, shape index: {}]
  %s11 = inlined_call_operand.vmem [shape: f32[4,1], index: 11, kind: input, shape index: {}]
  %s12 = inlined_call_operand.hbm [shape: f32[1,8,16], index: 12, kind: output, shape index: {}]
  %s13 = sld [smem:[#allocation0]]
  $region89: #{tpu_custom_call.1} parent=0
    _
  %s15 = ssub.s32 1, %s13
  %s16 = scalar_select 0, %s15, %s13
  $region1: #{tpu_custom_call.1} parent=0
    #allocation3 [shape = 'u8[4096]{0}', space=vmem, size = 0x1000, scoped, tag = 'output window, operand 0, single buffered']
    #allocation4 [shape = 's32[2]{0}', space=sflag, size = 0x8, scoped, tag = 'scoped memory for tpu_custom_call.1']
    %17 = vsyncpa [#allocation4], 0
    loop: start=0, step=1, limit=4
    $region2: #{tpu_custom_call.1} parent=1 // loop_pre_header
      _
    $region3: #{tpu_custom_call.1} parent=1 // loop_header
      %s19 = sphi 0, %s23
      %p20 = scmp.ge.s32.totalorder %s19, 4
      %s26 = sphi 0, %s38
      %s27 = sphi 0, %s34
      %s28 = sphi 0, %s26
      %s29 = sphi 0, %s27
      %s30 = sphi 0, %s28
      %s31 = sphi 0, %s29
      %s41 = sphi 0, %s43
      %s44 = sphi 0, %s41
      %s45 = sphi 0, %s44
      %s61 = sphi 0, %s45
      %s65 = sphi 0, %s65
      %s67 = sphi 0, %s65
      %s68 = sphi 0, %s67
      %s82 = sphi 0, %s68
      %s88 = sphi 0, %s90
      %s91 = sphi 0, %s88
      %s92 = sphi 0, %s91
      %s108 = sphi 0, %s92
      %s114 = sphi 0, %s116
      %s117 = sphi 0, %s114
      %s118 = sphi 0, %s117
      %s134 = sphi 0, %s118
      %s140 = sphi 0, %s142
      %s143 = sphi 0, %s140
      %s144 = sphi 0, %s143
      %s160 = sphi 0, %s144
      %s166 = sphi 0, %s168
      %s169 = sphi 0, %s166
      %s170 = sphi 0, %s169
      %s186 = sphi 0, %s170
      %s192 = sphi 0, %s194
      %s195 = sphi 0, %s192
      %s196 = sphi 0, %s195
      %s212 = sphi 0, %s196
      %s218 = sphi 0, %s220
      %s221 = sphi 0, %s218
      %s222 = sphi 0, %s221
      %s238 = sphi 0, %s222
      %s244 = sphi 0, %s246
      %s247 = sphi 0, %s244
      %s248 = sphi 0, %s247
      %s264 = sphi 0, %s248
      %s270 = sphi 0, %s272
      %s273 = sphi 0, %s270
      %s274 = sphi 0, %s273
      %s290 = sphi 0, %s274
      %s294 = sphi 0, %s294
      %s296 = sphi 0, %s294
      %s297 = sphi 0, %s296
      %s311 = sphi 0, %s297
      %s315 = sphi 0, %s315
      %s317 = sphi 0, %s315
      %s318 = sphi 0, %s317
      %s332 = sphi 0, %s318
      %s338 = sphi 0, %s340
      %s341 = sphi 0, %s338
      %s342 = sphi 0, %s341
      %s358 = sphi 0, %s342
    $region4: #{tpu_custom_call.1} parent=1 // loop_header_branch
      %22 = sbr.rel (%p20) target = $region8
    $region5: #{tpu_custom_call.1} parent=1 // loop_body
      %s24 = ssub.s32 %s19, 1
      %s25 = ssub.s32 %s19, 2
      %s32 = sadd.s32 1, %s27
      %p33 = scmp.ge.s32.totalorder %s32, 2
      %s34 = scalar_select %p33, 0, %s32
      %s35 = sadd.s32 1, %s26
      %s36 = scalar_select %p33, %s35, %s26
      %p37 = scmp.ge.s32.totalorder %s36, 1
      %s38 = scalar_select %p37, 0, %s36
      %s39 = ssub.s32 %s26, %s38
      %p40 = scmp.eq.s32.totalorder %s39, 0
      %s42 = sadd.s32 %s41, 1
      %s43 = scalar_select %p40, %s41, %s42
      %p46 = pneg %p40
      %p47 = scmp.eq.s32.totalorder %s19, 1
      %p48 = por %p46, %p47
      %p49 = scmp.ne.s32.totalorder %s41, %s44
      %p50 = scmp.eq.s32.totalorder %s19, 0
      %p51 = por %p49, %p50
      %p52 = scmp.ne.s32.totalorder %s41, %s44
      %p53 = scmp.eq.s32.totalorder %s24, 1
      %p54 = por %p52, %p53
      %p55 = scmp.ne.s32.totalorder %s44, %s45
      %p56 = scmp.eq.s32.totalorder %s24, 0
      %p57 = por %p55, %p56
      %p58 = scmp.ne.s32.totalorder %s44, %s45
      %p59 = scmp.eq.s32.totalorder %s25, 1
      %p60 = por %p58, %p59
      %p62 = scmp.ne.s32.totalorder %s45, %s61
      %p63 = scmp.eq.s32.totalorder %s25, 0
      %p64 = por %p62, %p63
      %s66 = sadd.s32 %s65, 1
      %p69 = scmp.eq.s32.totalorder %s19, 1
      %p70 = scmp.ne.s32.totalorder %s65, %s67
      %p71 = scmp.eq.s32.totalorder %s19, 0
      %p72 = por %p70, %p71
      %p73 = scmp.ne.s32.totalorder %s65, %s67
      %p74 = scmp.eq.s32.totalorder %s24, 1
      %p75 = por %p73, %p74
      %p76 = scmp.ne.s32.totalorder %s67, %s68
      %p77 = scmp.eq.s32.totalorder %s24, 0
      %p78 = por %p76, %p77
      %p79 = scmp.ne.s32.totalorder %s67, %s68
      %p80 = scmp.eq.s32.totalorder %s25, 1
      %p81 = por %p79, %p80
      %p83 = scmp.ne.s32.totalorder %s68, %s82
      %p84 = scmp.eq.s32.totalorder %s25, 0
      %p85 = por %p83, %p84
      %s86 = ssub.s32 %s27, %s34
      %p87 = scmp.eq.s32.totalorder %s86, 0
      %s89 = sadd.s32 %s88, 1
      %s90 = scalar_select %p87, %s88, %s89
      %p93 = pneg %p87
      %p94 = scmp.eq.s32.totalorder %s19, 1
      %p95 = por %p93, %p94
      %p96 = scmp.ne.s32.totalorder %s88, %s91
      %p97 = scmp.eq.s32.totalorder %s19, 0
      %p98 = por %p96, %p97
      %p99 = scmp.ne.s32.totalorder %s88, %s91
      %p100 = scmp.eq.s32.totalorder %s24, 1
      %p101 = por %p99, %p100
      %p102 = scmp.ne.s32.totalorder %s91, %s92
      %p103 = scmp.eq.s32.totalorder %s24, 0
      %p104 = por %p102, %p103
      %p105 = scmp.ne.s32.totalorder %s91, %s92
      %p106 = scmp.eq.s32.totalorder %s25, 1
      %p107 = por %p105, %p106
      %p109 = scmp.ne.s32.totalorder %s92, %s108
      %p110 = scmp.eq.s32.totalorder %s25, 0
      %p111 = por %p109, %p110
      %s112 = ssub.s32 %s27, %s34
      %p113 = scmp.eq.s32.totalorder %s112, 0
      %s115 = sadd.s32 %s114, 1
      %s116 = scalar_select %p113, %s114, %s115
      %p119 = pneg %p113
      %p120 = scmp.eq.s32.totalorder %s19, 1
      %p121 = por %p119, %p120
      %p122 = scmp.ne.s32.totalorder %s114, %s117
      %p123 = scmp.eq.s32.totalorder %s19, 0
      %p124 = por %p122, %p123
      %p125 = scmp.ne.s32.totalorder %s114, %s117
      %p126 = scmp.eq.s32.totalorder %s24, 1
      %p127 = por %p125, %p126
      %p128 = scmp.ne.s32.totalorder %s117, %s118
      %p129 = scmp.eq.s32.totalorder %s24, 0
      %p130 = por %p128, %p129
      %p131 = scmp.ne.s32.totalorder %s117, %s118
      %p132 = scmp.eq.s32.totalorder %s25, 1
      %p133 = por %p131, %p132
      %p135 = scmp.ne.s32.totalorder %s118, %s134
      %p136 = scmp.eq.s32.totalorder %s25, 0
      %p137 = por %p135, %p136
      %s138 = ssub.s32 %s27, %s34
      %p139 = scmp.eq.s32.totalorder %s138, 0
      %s141 = sadd.s32 %s140, 1
      %s142 = scalar_select %p139, %s140, %s141
      %p145 = pneg %p139
      %p146 = scmp.eq.s32.totalorder %s19, 1
      %p147 = por %p145, %p146
      %p148 = scmp.ne.s32.totalorder %s140, %s143
      %p149 = scmp.eq.s32.totalorder %s19, 0
      %p150 = por %p148, %p149
      %p151 = scmp.ne.s32.totalorder %s140, %s143
      %p152 = scmp.eq.s32.totalorder %s24, 1
      %p153 = por %p151, %p152
      %p154 = scmp.ne.s32.totalorder %s143, %s144
      %p155 = scmp.eq.s32.totalorder %s24, 0
      %p156 = por %p154, %p155
      %p157 = scmp.ne.s32.totalorder %s143, %s144
      %p158 = scmp.eq.s32.totalorder %s25, 1
      %p159 = por %p157, %p158
      %p161 = scmp.ne.s32.totalorder %s144, %s160
      %p162 = scmp.eq.s32.totalorder %s25, 0
      %p163 = por %p161, %p162
      %s164 = ssub.s32 %s27, %s34
      %p165 = scmp.eq.s32.totalorder %s164, 0
      %s167 = sadd.s32 %s166, 1
      %s168 = scalar_select %p165, %s166, %s167
      %p171 = pneg %p165
      %p172 = scmp.eq.s32.totalorder %s19, 1
      %p173 = por %p171, %p172
      %p174 = scmp.ne.s32.totalorder %s166, %s169
      %p175 = scmp.eq.s32.totalorder %s19, 0
      %p176 = por %p174, %p175
      %p177 = scmp.ne.s32.totalorder %s166, %s169
      %p178 = scmp.eq.s32.totalorder %s24, 1
      %p179 = por %p177, %p178
      %p180 = scmp.ne.s32.totalorder %s169, %s170
      %p181 = scmp.eq.s32.totalorder %s24, 0
      %p182 = por %p180, %p181
      %p183 = scmp.ne.s32.totalorder %s169, %s170
      %p184 = scmp.eq.s32.totalorder %s25, 1
      %p185 = por %p183, %p184
      %p187 = scmp.ne.s32.totalorder %s170, %s186
      %p188 = scmp.eq.s32.totalorder %s25, 0
      %p189 = por %p187, %p188
      %s190 = ssub.s32 %s27, %s34
      %p191 = scmp.eq.s32.totalorder %s190, 0
      %s193 = sadd.s32 %s192, 1
      %s194 = scalar_select %p191, %s192, %s193
      %p197 = pneg %p191
      %p198 = scmp.eq.s32.totalorder %s19, 1
      %p199 = por %p197, %p198
      %p200 = scmp.ne.s32.totalorder %s192, %s195
      %p201 = scmp.eq.s32.totalorder %s19, 0
      %p202 = por %p200, %p201
      %p203 = scmp.ne.s32.totalorder %s192, %s195
      %p204 = scmp.eq.s32.totalorder %s24, 1
      %p205 = por %p203, %p204
      %p206 = scmp.ne.s32.totalorder %s195, %s196
      %p207 = scmp.eq.s32.totalorder %s24, 0
      %p208 = por %p206, %p207
      %p209 = scmp.ne.s32.totalorder %s195, %s196
      %p210 = scmp.eq.s32.totalorder %s25, 1
      %p211 = por %p209, %p210
      %p213 = scmp.ne.s32.totalorder %s196, %s212
      %p214 = scmp.eq.s32.totalorder %s25, 0
      %p215 = por %p213, %p214
      %s216 = ssub.s32 %s27, %s34
      %p217 = scmp.eq.s32.totalorder %s216, 0
      %s219 = sadd.s32 %s218, 1
      %s220 = scalar_select %p217, %s218, %s219
      %p223 = pneg %p217
      %p224 = scmp.eq.s32.totalorder %s19, 1
      %p225 = por %p223, %p224
      %p226 = scmp.ne.s32.totalorder %s218, %s221
      %p227 = scmp.eq.s32.totalorder %s19, 0
      %p228 = por %p226, %p227
      %p229 = scmp.ne.s32.totalorder %s218, %s221
      %p230 = scmp.eq.s32.totalorder %s24, 1
      %p231 = por %p229, %p230
      %p232 = scmp.ne.s32.totalorder %s221, %s222
      %p233 = scmp.eq.s32.totalorder %s24, 0
      %p234 = por %p232, %p233
      %p235 = scmp.ne.s32.totalorder %s221, %s222
      %p236 = scmp.eq.s32.totalorder %s25, 1
      %p237 = por %p235, %p236
      %p239 = scmp.ne.s32.totalorder %s222, %s238
      %p240 = scmp.eq.s32.totalorder %s25, 0
      %p241 = por %p239, %p240
      %s242 = ssub.s32 %s27, %s34
      %p243 = scmp.eq.s32.totalorder %s242, 0
      %s245 = sadd.s32 %s244, 1
      %s246 = scalar_select %p243, %s244, %s245
      %p249 = pneg %p243
      %p250 = scmp.eq.s32.totalorder %s19, 1
      %p251 = por %p249, %p250
      %p252 = scmp.ne.s32.totalorder %s244, %s247
      %p253 = scmp.eq.s32.totalorder %s19, 0
      %p254 = por %p252, %p253
      %p255 = scmp.ne.s32.totalorder %s244, %s247
      %p256 = scmp.eq.s32.totalorder %s24, 1
      %p257 = por %p255, %p256
      %p258 = scmp.ne.s32.totalorder %s247, %s248
      %p259 = scmp.eq.s32.totalorder %s24, 0
      %p260 = por %p258, %p259
      %p261 = scmp.ne.s32.totalorder %s247, %s248
      %p262 = scmp.eq.s32.totalorder %s25, 1
      %p263 = por %p261, %p262
      %p265 = scmp.ne.s32.totalorder %s248, %s264
      %p266 = scmp.eq.s32.totalorder %s25, 0
      %p267 = por %p265, %p266
      %s268 = ssub.s32 %s27, %s34
      %p269 = scmp.eq.s32.totalorder %s268, 0
      %s271 = sadd.s32 %s270, 1
      %s272 = scalar_select %p269, %s270, %s271
      %p275 = pneg %p269
      %p276 = scmp.eq.s32.totalorder %s19, 1
      %p277 = por %p275, %p276
      %p278 = scmp.ne.s32.totalorder %s270, %s273
      %p279 = scmp.eq.s32.totalorder %s19, 0
      %p280 = por %p278, %p279
      %p281 = scmp.ne.s32.totalorder %s270, %s273
      %p282 = scmp.eq.s32.totalorder %s24, 1
      %p283 = por %p281, %p282
      %p284 = scmp.ne.s32.totalorder %s273, %s274
      %p285 = scmp.eq.s32.totalorder %s24, 0
      %p286 = por %p284, %p285
      %p287 = scmp.ne.s32.totalorder %s273, %s274
      %p288 = scmp.eq.s32.totalorder %s25, 1
      %p289 = por %p287, %p288
      %p291 = scmp.ne.s32.totalorder %s274, %s290
      %p292 = scmp.eq.s32.totalorder %s25, 0
      %p293 = por %p291, %p292
      %s295 = sadd.s32 %s294, 1
      %p298 = scmp.eq.s32.totalorder %s19, 1
      %p299 = scmp.ne.s32.totalorder %s294, %s296
      %p300 = scmp.eq.s32.totalorder %s19, 0
      %p301 = por %p299, %p300
      %p302 = scmp.ne.s32.totalorder %s294, %s296
      %p303 = scmp.eq.s32.totalorder %s24, 1
      %p304 = por %p302, %p303
      %p305 = scmp.ne.s32.totalorder %s296, %s297
      %p306 = scmp.eq.s32.totalorder %s24, 0
      %p307 = por %p305, %p306
      %p308 = scmp.ne.s32.totalorder %s296, %s297
      %p309 = scmp.eq.s32.totalorder %s25, 1
      %p310 = por %p308, %p309
      %p312 = scmp.ne.s32.totalorder %s297, %s311
      %p313 = scmp.eq.s32.totalorder %s25, 0
      %p314 = por %p312, %p313
      %s316 = sadd.s32 %s315, 1
      %p319 = scmp.eq.s32.totalorder %s19, 1
      %p320 = scmp.ne.s32.totalorder %s315, %s317
      %p321 = scmp.eq.s32.totalorder %s19, 0
      %p322 = por %p320, %p321
      %p323 = scmp.ne.s32.totalorder %s315, %s317
      %p324 = scmp.eq.s32.totalorder %s24, 1
      %p325 = por %p323, %p324
      %p326 = scmp.ne.s32.totalorder %s317, %s318
      %p327 = scmp.eq.s32.totalorder %s24, 0
      %p328 = por %p326, %p327
      %p329 = scmp.ne.s32.totalorder %s317, %s318
      %p330 = scmp.eq.s32.totalorder %s25, 1
      %p331 = por %p329, %p330
      %p333 = scmp.ne.s32.totalorder %s318, %s332
      %p334 = scmp.eq.s32.totalorder %s25, 0
      %p335 = por %p333, %p334
      %s336 = ssub.s32 %s26, %s38
      %p337 = scmp.eq.s32.totalorder %s336, 0
      %s339 = sadd.s32 %s338, 1
      %s340 = scalar_select %p337, %s338, %s339
      %p343 = pneg %p337
      %p344 = scmp.eq.s32.totalorder %s19, 1
      %p345 = por %p343, %p344
      %p346 = scmp.ne.s32.totalorder %s338, %s341
      %p347 = scmp.eq.s32.totalorder %s19, 0
      %p348 = por %p346, %p347
      %p349 = scmp.ne.s32.totalorder %s338, %s341
      %p350 = scmp.eq.s32.totalorder %s24, 1
      %p351 = por %p349, %p350
      %p352 = scmp.ne.s32.totalorder %s341, %s342
      %p353 = scmp.eq.s32.totalorder %s24, 0
      %p354 = por %p352, %p353
      %p355 = scmp.ne.s32.totalorder %s341, %s342
      %p356 = scmp.eq.s32.totalorder %s25, 1
      %p357 = por %p355, %p356
      %p359 = scmp.ne.s32.totalorder %s342, %s358
      %p360 = scmp.eq.s32.totalorder %s25, 0
      %p361 = por %p359, %p360
      %p362 = scmp.le.s32.totalorder 1, %s19
      %p363 = scmp.lt.s32.totalorder %s19, 3
      %p364 = pnand %p362, %p363
      %p365 = pneg %p364
      // Predicated region
      $region9: #{tpu_custom_call.1} parent=5 // pred_check
        _
      $region10: #{tpu_custom_call.1} parent=5 // pred_check_branch
        %367 = sbr.rel (%p364) target = $region12
      $region11: #{tpu_custom_call.1} parent=5 // pred_region
        %s368 = ssub.s32 %s19, 1
        // Predicated region
        $region13: #{tpu_custom_call.1} parent=11 // pred_check
          %p369 = pneg %p57
        $region14: #{tpu_custom_call.1} parent=11 // pred_check_branch
          %371 = sbr.rel (%p369) target = $region16
        $region15: #{tpu_custom_call.1} parent=11 // pred_region
          %p372 = scmp.lt.s32.totalorder %s28, 0
          %s373 = scalar_select %p372, %s28, 0
          %s374 = smul.addr %s373, 8
          %s375 = scalar_lea.vmem %s0, %s374
        $region16: #{tpu_custom_call.1} parent=11 // pred_fallthru
          _
        // Predicated region
        $region17: #{tpu_custom_call.1} parent=11 // pred_check
          %p376 = pneg %p78
        $region18: #{tpu_custom_call.1} parent=11 // pred_check_branch
          %378 = sbr.rel (%p376) target = $region20
        $region19: #{tpu_custom_call.1} parent=11 // pred_region
          _
        $region20: #{tpu_custom_call.1} parent=11 // pred_fallthru
          _
        // Predicated region
        $region21: #{tpu_custom_call.1} parent=11 // pred_check
          %p379 = pneg %p307
        $region22: #{tpu_custom_call.1} parent=11 // pred_check_branch
          %381 = sbr.rel (%p379) target = $region24
        $region23: #{tpu_custom_call.1} parent=11 // pred_region
          _
        $region24: #{tpu_custom_call.1} parent=11 // pred_fallthru
          _
        // Predicated region
        $region25: #{tpu_custom_call.1} parent=11 // pred_check
          %p382 = pneg %p328
        $region26: #{tpu_custom_call.1} parent=11 // pred_check_branch
          %384 = sbr.rel (%p382) target = $region28
        $region27: #{tpu_custom_call.1} parent=11 // pred_region
          _
        $region28: #{tpu_custom_call.1} parent=11 // pred_fallthru
          _
      $region12: #{tpu_custom_call.1} parent=5 // pred_fallthru
        _
      %p385 = scmp.lt.s32.totalorder %s19, 2
      // Predicated region
      $region29: #{tpu_custom_call.1} parent=5 // pred_check
        %p386 = pneg %p385
      $region30: #{tpu_custom_call.1} parent=5 // pred_check_branch
        %388 = sbr.rel (%p386) target = $region32
      $region31: #{tpu_custom_call.1} parent=5 // pred_region
        // Predicated region
        $region33: #{tpu_custom_call.1} parent=31 // pred_check
          %p389 = pneg %p98
        $region34: #{tpu_custom_call.1} parent=31 // pred_check_branch
          %391 = sbr.rel (%p389) target = $region36
        $region35: #{tpu_custom_call.1} parent=31 // pred_region
          %p392 = scmp.lt.s32.totalorder %s27, 1
          %s393 = scalar_select %p392, %s27, 1
          %s394 = smul.addr %s393, 4
          %s395 = scalar_lea.vmem %s2, %s394
        $region36: #{tpu_custom_call.1} parent=31 // pred_fallthru
          _
        // Predicated region
        $region37: #{tpu_custom_call.1} parent=31 // pred_check
          %p396 = pneg %p124
        $region38: #{tpu_custom_call.1} parent=31 // pred_check_branch
          %398 = sbr.rel (%p396) target = $region40
        $region39: #{tpu_custom_call.1} parent=31 // pred_region
          %p399 = scmp.lt.s32.totalorder %s27, 1
          %s400 = scalar_select %p399, %s27, 1
          %s401 = smul.addr %s400, 4
          %s402 = scalar_lea.vmem %s3, %s401
        $region40: #{tpu_custom_call.1} parent=31 // pred_fallthru
          _
        // Predicated region
        $region41: #{tpu_custom_call.1} parent=31 // pred_check
          %p403 = pneg %p150
        $region42: #{tpu_custom_call.1} parent=31 // pred_check_branch
          %405 = sbr.rel (%p403) target = $region44
        $region43: #{tpu_custom_call.1} parent=31 // pred_region
          %p406 = scmp.lt.s32.totalorder %s27, 1
          %s407 = scalar_select %p406, %s27, 1
          %s408 = smul.addr %s407, 2
          %s409 = smul.addr %s408, 8
          %s410 = scalar_lea.vmem %s4, %s409
        $region44: #{tpu_custom_call.1} parent=31 // pred_fallthru
          _
        // Predicated region
        $region45: #{tpu_custom_call.1} parent=31 // pred_check
          %p411 = pneg %p176
        $region46: #{tpu_custom_call.1} parent=31 // pred_check_branch
          %413 = sbr.rel (%p411) target = $region48
        $region47: #{tpu_custom_call.1} parent=31 // pred_region
          %p414 = scmp.lt.s32.totalorder %s27, 1
          %s415 = scalar_select %p414, %s27, 1
          %s416 = smul.addr %s415, 8
          %s417 = scalar_lea.vmem %s5, %s416
        $region48: #{tpu_custom_call.1} parent=31 // pred_fallthru
          _
        // Predicated region
        $region49: #{tpu_custom_call.1} parent=31 // pred_check
          %p418 = pneg %p202
        $region50: #{tpu_custom_call.1} parent=31 // pred_check_branch
          %420 = sbr.rel (%p418) target = $region52
        $region51: #{tpu_custom_call.1} parent=31 // pred_region
          %p421 = scmp.lt.s32.totalorder %s27, 1
          %s422 = scalar_select %p421, %s27, 1
          %s423 = smul.addr %s422, 8
          %s424 = smul.addr %s423, 8
          %s425 = scalar_lea.vmem %s6, %s424
        $region52: #{tpu_custom_call.1} parent=31 // pred_fallthru
          _
        // Predicated region
        $region53: #{tpu_custom_call.1} parent=31 // pred_check
          %p426 = pneg %p228
        $region54: #{tpu_custom_call.1} parent=31 // pred_check_branch
          %428 = sbr.rel (%p426) target = $region56
        $region55: #{tpu_custom_call.1} parent=31 // pred_region
          %p429 = scmp.lt.s32.totalorder %s27, 1
          %s430 = scalar_select %p429, %s27, 1
          %s431 = smul.addr %s430, 8
          %s432 = smul.addr %s431, 8
          %s433 = scalar_lea.vmem %s7, %s432
        $region56: #{tpu_custom_call.1} parent=31 // pred_fallthru
          _
        // Predicated region
        $region57: #{tpu_custom_call.1} parent=31 // pred_check
          %p434 = pneg %p254
        $region58: #{tpu_custom_call.1} parent=31 // pred_check_branch
          %436 = sbr.rel (%p434) target = $region60
        $region59: #{tpu_custom_call.1} parent=31 // pred_region
          %p437 = scmp.lt.s32.totalorder %s27, 1
          %s438 = scalar_select %p437, %s27, 1
          %s439 = smul.addr %s438, 8
          %s440 = scalar_lea.vmem %s8, %s439
        $region60: #{tpu_custom_call.1} parent=31 // pred_fallthru
          _
        // Predicated region
        $region61: #{tpu_custom_call.1} parent=31 // pred_check
          %p441 = pneg %p280
        $region62: #{tpu_custom_call.1} parent=31 // pred_check_branch
          %443 = sbr.rel (%p441) target = $region64
        $region63: #{tpu_custom_call.1} parent=31 // pred_region
          %p444 = scmp.lt.s32.totalorder %s27, 1
          %s445 = scalar_select %p444, %s27, 1
          %s446 = smul.addr %s445, 8
          %s447 = scalar_lea.vmem %s9, %s446
        $region64: #{tpu_custom_call.1} parent=31 // pred_fallthru
          _
      $region32: #{tpu_custom_call.1} parent=5 // pred_fallthru
        _
      %p448 = scmp.le.s32.totalorder 1, %s19
      %p449 = scmp.lt.s32.totalorder %s19, 3
      %p450 = pnand %p448, %p449
      %p451 = pneg %p450
      // Predicated region
      $region65: #{tpu_custom_call.1} parent=5 // pred_check
        _
      $region66: #{tpu_custom_call.1} parent=5 // pred_check_branch
        %453 = sbr.rel (%p450) target = $region68
      $region67: #{tpu_custom_call.1} parent=5 // pred_region
        %s454 = ssub.s32 %s19, 1
        %p455 = scmp.lt.s32.totalorder %s28, 0
        %s456 = scalar_select %p455, %s28, 0
        %s457 = smul.addr %s456, 8
        %s458 = scalar_lea.vmem %s0, %s457
        %p459 = pneg %p57
        %p460 = pneg %p54
        %p461 = pneg %p78
        %p462 = pneg %p75
        %p463 = scmp.lt.s32.totalorder %s29, 1
        %s464 = scalar_select %p463, %s29, 1
        %s465 = smul.addr %s464, 4
        %s466 = scalar_lea.vmem %s2, %s465
        %p467 = pneg %p104
        %p468 = pneg %p101
        %p469 = scmp.lt.s32.totalorder %s29, 1
        %s470 = scalar_select %p469, %s29, 1
        %s471 = smul.addr %s470, 4
        %s472 = scalar_lea.vmem %s3, %s471
        %p473 = pneg %p130
        %p474 = pneg %p127
        %p475 = scmp.lt.s32.totalorder %s29, 1
        %s476 = scalar_select %p475, %s29, 1
        %s477 = smul.addr %s476, 2
        %s478 = smul.addr %s477, 8
        %s479 = scalar_lea.vmem %s4, %s478
        %p480 = pneg %p156
        %p481 = pneg %p153
        %p482 = scmp.lt.s32.totalorder %s29, 1
        %s483 = scalar_select %p482, %s29, 1
        %s484 = smul.addr %s483, 8
        %s485 = scalar_lea.vmem %s5, %s484
        %p486 = pneg %p182
        %p487 = pneg %p179
        %p488 = scmp.lt.s32.totalorder %s29, 1
        %s489 = scalar_select %p488, %s29, 1
        %s490 = smul.addr %s489, 8
        %s491 = smul.addr %s490, 8
        %s492 = scalar_lea.vmem %s6, %s491
        %p493 = pneg %p208
        %p494 = pneg %p205
        %p495 = scmp.lt.s32.totalorder %s29, 1
        %s496 = scalar_select %p495, %s29, 1
        %s497 = smul.addr %s496, 8
        %s498 = smul.addr %s497, 8
        %s499 = scalar_lea.vmem %s7, %s498
        %p500 = pneg %p234
        %p501 = pneg %p231
        %p502 = scmp.lt.s32.totalorder %s29, 1
        %s503 = scalar_select %p502, %s29, 1
        %s504 = smul.addr %s503, 8
        %s505 = scalar_lea.vmem %s8, %s504
        %p506 = pneg %p260
        %p507 = pneg %p257
        %p508 = scmp.lt.s32.totalorder %s29, 1
        %s509 = scalar_select %p508, %s29, 1
        %s510 = smul.addr %s509, 8
        %s511 = scalar_lea.vmem %s9, %s510
        %p512 = pneg %p286
        %p513 = pneg %p283
        %p514 = pneg %p307
        %p515 = pneg %p304
        %p516 = pneg %p328
        %p517 = pneg %p325
        %p518 = pneg %p354
        %p519 = pneg %p351
        %p520 = scmp.lt.s32.totalorder %s28, 0
        %s521 = scalar_select %p520, %s28, 0
        %s522 = smul.addr %s521, 8
        %s523 = scalar_lea.vmem %s0, %s522
        %p524 = scmp.lt.s32.totalorder %s29, 1
        %s525 = scalar_select %p524, %s29, 1
        %s526 = smul.addr %s525, 4
        %s527 = scalar_lea.vmem %s2, %s526
        %p528 = scmp.lt.s32.totalorder %s29, 1
        %s529 = scalar_select %p528, %s29, 1
        %s530 = smul.addr %s529, 4
        %s531 = scalar_lea.vmem %s3, %s530
        %p532 = scmp.lt.s32.totalorder %s29, 1
        %s533 = scalar_select %p532, %s29, 1
        %s534 = smul.addr %s533, 2
        %s535 = smul.addr %s534, 8
        %s536 = scalar_lea.vmem %s4, %s535
        %p537 = scmp.lt.s32.totalorder %s29, 1
        %s538 = scalar_select %p537, %s29, 1
        %s539 = smul.addr %s538, 8
        %s540 = scalar_lea.vmem %s5, %s539
        %p541 = scmp.lt.s32.totalorder %s29, 1
        %s542 = scalar_select %p541, %s29, 1
        %s543 = smul.addr %s542, 8
        %s544 = smul.addr %s543, 8
        %s545 = scalar_lea.vmem %s6, %s544
        %p546 = scmp.lt.s32.totalorder %s29, 1
        %s547 = scalar_select %p546, %s29, 1
        %s548 = smul.addr %s547, 8
        %s549 = smul.addr %s548, 8
        %s550 = scalar_lea.vmem %s7, %s549
        %p551 = scmp.lt.s32.totalorder %s29, 1
        %s552 = scalar_select %p551, %s29, 1
        %s553 = smul.addr %s552, 8
        %s554 = scalar_lea.vmem %s8, %s553
        %p555 = scmp.lt.s32.totalorder %s29, 1
        %s556 = scalar_select %p555, %s29, 1
        %s557 = smul.addr %s556, 8
        %s558 = scalar_lea.vmem %s9, %s557
        %p559 = scmp.eq.s32.totalorder %s29, 0
        // Predicated region
        $region69: #{tpu_custom_call.1} parent=67 // pred_check
          %p560 = pneg %p559
        $region70: #{tpu_custom_call.1} parent=67 // pred_check_branch
          %562 = sbr.rel (%p560) target = $region72
        $region71: #{tpu_custom_call.1} parent=67 // pred_region
          %v563 = vld [vmem:[%s523] sm:$0xff]
          %v564 = vld [vmem:[%s1] sm:$0xff]
          %v565 = vadd.f32 %v563, %v564
          %vm566 = vcmask 130048
          %567 = vst.msk [vmem:[#allocation2] sm:$0xff] %vm566, %v565
        $region72: #{tpu_custom_call.1} parent=67 // pred_fallthru
          _
        %v568 = vld [vmem:[#allocation2] sm:$0xff]
        %v570 = vrot.slane %v568, 4
        %vm572 = vcmask 125952
        %v573 = vsel %vm572, %v568, 0.0
        %v574 = vrot.slane %v573, 4
        %v575 = vadd.f32 %v573, %v574
        %v576 = vrot.slane %v575, 2
        %v577 = vadd.f32 %v575, %v576
        %v578 = vrot.slane %v577, 1
        %v579 = vadd.f32 %v577, %v578
        %v580 = vsel %vm572, %v570, 0.0
        %v581 = vrot.slane %v580, 4
        %v582 = vadd.f32 %v580, %v581
        %v583 = vrot.slane %v582, 2
        %v584 = vadd.f32 %v582, %v583
        %v585 = vrot.slane %v584, 1
        %v586 = vadd.f32 %v584, %v585
        %v587 = vrcp.pop 4.0
        %v588 = vmul.f32 4.0, %v587
        %v589 = vsub.f32 1.0, %v588
        %v590 = vmul.f32 %v587, %v589
        %v591 = vadd.f32 %v587, %v590
        %vm592 = vweird.f32 %v587
        %v593 = vsel %vm592, %v587, %v591
        %v594 = vmul.f32 %v579, %v593
        %v595 = vmul.f32 %v586, %v593
        %v596 = vsub.f32 %v568, %v594
        %v597 = vsub.f32 %v570, %v595
        %v598 = vmul.f32 %v596, %v596
        %v599 = vmul.f32 %v597, %v597
        %v600 = vsel %vm572, %v598, 0.0
        %v601 = vrot.slane %v600, 4
        %v602 = vadd.f32 %v600, %v601
        %v603 = vrot.slane %v602, 2
        %v604 = vadd.f32 %v602, %v603
        %v605 = vrot.slane %v604, 1
        %v606 = vadd.f32 %v604, %v605
        %v607 = vsel %vm572, %v599, 0.0
        %v608 = vrot.slane %v607, 4
        %v609 = vadd.f32 %v607, %v608
        %v610 = vrot.slane %v609, 2
        %v611 = vadd.f32 %v609, %v610
        %v612 = vrot.slane %v611, 1
        %v613 = vadd.f32 %v611, %v612
        %v614 = vmul.f32 %v606, %v593
        %v615 = vmul.f32 %v613, %v593
        %v616 = vadd.f32 %v614, 1e-05
        %v617 = vadd.f32 %v615, 1e-05
        %v618 = vrsqrt.pop %v616
        %v619 = vmul.f32 %v618, %v616
        %v620 = vmul.f32 %v619, %v618
        %v621 = vmul.f32 0.5, %v620
        %v622 = vsub.f32 1.5, %v621
        %v623 = vmul.f32 %v618, %v622
        %vm624 = vweird.f32 %v616
        %vm625 = vweird.f32 %v618
        %vm626 = vmor %vm624, %vm625
        %v627 = vsel %vm626, %v618, %v623
        %v628 = vrsqrt.pop %v617
        %v629 = vmul.f32 %v628, %v617
        %v630 = vmul.f32 %v629, %v628
        %v631 = vmul.f32 0.5, %v630
        %v632 = vsub.f32 1.5, %v631
        %v633 = vmul.f32 %v628, %v632
        %vm634 = vweird.f32 %v617
        %vm635 = vweird.f32 %v628
        %vm636 = vmor %vm634, %vm635
        %v637 = vsel %vm636, %v628, %v633
        %v638 = vmul.f32 %v596, %v627
        %v639 = vmul.f32 %v597, %v637
        %v640 = vld [vmem:[%s527] sm:$0xf]
        %642 = vset.pattern.permute.xlu0 0
        %643 = vperm.xlu0 %642, %v640
        %v644 = vpop.permute.xlu0 %643
        %v646 = vmul.f32 %v638, %v644
        %v647 = vmul.f32 %v639, %v644
        %v648 = vld [vmem:[%s531] sm:$0xf]
        %650 = vset.pattern.permute.xlu0 0
        %651 = vperm.xlu0 %650, %v648
        %v652 = vpop.permute.xlu0 %651
        %v654 = vadd.f32 %v646, %v652
        %v655 = vadd.f32 %v647, %v652
        %v656 = vld [vmem:[%s536] sm:$0xff]
        %v657 = vld [vmem:[%s536 + $0x8] sm:$0xff]
        %660 = vst [vmem:[#allocation1] ss:$2 sm:$0xff] %v654
        %s661 = scalar_lea.vmem [#allocation1], 1
        %662 = vst [vmem:[%s661] ss:$2 sm:$0xff] %v655
        %v663 = vld.sshfl [vmem:[#allocation1] sm:$0xff pattern:$0x75316420]
        %vm664 = vcmask 130048
        %v665 = vsel %vm664, %v663, 0
        %667 = vmatpush.msra.mxu0 0.0
        %668 = vmatpush.msra.mxu0 0.0
        %669 = vmatpush.msra.mxu0 0.0
        %670 = vmatpush.msra.mxu0 0.0
        %671 = vmatpush.msra.mxu0 0.0
        %672 = vmatpush.msra.mxu0 0.0
        %673 = vmatpush.msra.mxu0 0.0
        %674 = vmatpush.msra.mxu0 0.0
        %675 = vmatpush.msra.mxu0 0.0
        %676 = vmatpush.msra.mxu0 0.0
        %677 = vmatpush.msra.mxu0 0.0
        %678 = vmatpush.msra.mxu0 0.0
        %679 = vmatpush.msra.mxu0 0.0
        %680 = vmatpush.msra.mxu0 0.0
        %681 = vmatpush.msra.mxu0 %v657
        %682 = vmatpush.msra.mxu0 %v656
        %683 = vmatmul.f32.gmra.mxu0 %v665
        %v684 = vpop.f32.mrf.mxu0
        %v685 = vadd.f32 0.0, %v684
        %686 = vdwg.mxu0
        %v687 = vmul.f32 %v685, 0.5
        %v688 = vmul.f32 %v685, 0.70710677
        %v689 = vmul.f32 %v688, %v688
        %v690 = vmin.f32 16.0, %v689
        %v691 = vmul.f32 %v690, 2.1237322e-06
        %v692 = vadd.f32 %v691, 0.00028619796
        %v693 = vmul.f32 %v690, %v692
        %v694 = vadd.f32 %v693, 0.0036580483
        %v695 = vmul.f32 %v690, %v694
        %v696 = vadd.f32 %v695, 0.05243302
        %v697 = vmul.f32 %v690, %v696
        %v698 = vadd.f32 %v697, 0.18741608
        %v699 = vmul.f32 %v690, %v698
        %v700 = vadd.f32 %v699, 1.1283791
        %v701 = vmul.f32 %v688, %v700
        %v702 = vmul.f32 %v690, 3.8918573e-05
        %v703 = vadd.f32 %v702, 0.001143296
        %v704 = vmul.f32 %v690, %v703
        %v705 = vadd.f32 %v704, 0.014752088
        %v706 = vmul.f32 %v690, %v705
        %v707 = vadd.f32 %v706, 0.112945676
        %v708 = vmul.f32 %v690, %v707
        %v709 = vadd.f32 %v708, 0.4994258
        %v710 = vmul.f32 %v690, %v709
        %v711 = vadd.f32 %v710, 1.0
        %v712 = vrcp.pop %v711
        %v713 = vmul.f32 %v711, %v712
        %v714 = vsub.f32 1.0, %v713
        %v715 = vmul.f32 %v712, %v714
        %v716 = vadd.f32 %v712, %v715
        %vm717 = vweird.f32 %v711
        %vm718 = vweird.f32 %v712
        %vm719 = vmor %vm717, %vm718
        %v720 = vsel %vm719, %v712, %v716
        %v721 = vand.u32 2147483647, %v711
        %vm722 = vcmp.eq.f32.partialorder %v721, 8.507059e+37
        %v723 = vand.u32 %v711, 2147483648
        %v724 = vor.u32 1.1754944e-38, %v723
        %v725 = vsel %vm722, %v724, %v720
        %v726 = vmul.f32 %v701, %v725
        %v727 = vmin.f32 %v726, 1.0
        %v728 = vmax.f32 %v727, -1.0
        %v729 = vadd.f32 %v728, 1.0
        %v730 = vmul.f32 %v687, %v729
        %v731 = vld [vmem:[%s540] sm:$0xff]
        %vm732 = vcmask 64512
        %v734 = vsel %vm732, %v730, 0
        %736 = vmatpush.msra.mxu0 0.0
        %737 = vmatpush.msra.mxu0 0.0
        %738 = vmatpush.msra.mxu0 0.0
        %739 = vmatpush.msra.mxu0 0.0
        %740 = vmatpush.msra.mxu0 0.0
        %741 = vmatpush.msra.mxu0 0.0
        %742 = vmatpush.msra.mxu0 0.0
        %743 = vmatpush.msra.mxu0 0.0
        %744 = vmatpush.msra.mxu0 0.0
        %745 = vmatpush.msra.mxu0 0.0
        %746 = vmatpush.msra.mxu0 0.0
        %747 = vmatpush.msra.mxu0 0.0
        %748 = vmatpush.msra.mxu0 0.0
        %749 = vmatpush.msra.mxu0 0.0
        %750 = vmatpush.msra.mxu0 0.0
        %751 = vmatpush.msra.mxu0 %v731
        %752 = vmatmul.f32.gmra.mxu0 %v734
        %v753 = vpop.f32.mrf.mxu0
        %v754 = vadd.f32 0.0, %v753
        %755 = vdwg.mxu0
        %v756 = vmul.f32 %v754, 0.5
        %v757 = vtanh.pop %v756
        %v758 = vadd.f32 %v757, 1.0
        %v759 = vmul.f32 %v758, 0.5
        %v761 = vrot.slane %v759, 4
        %v763 = vmul.f32 %v654, %v759
        %v764 = vmul.f32 %v655, %v761
        %v765 = vadd.f32 %v763, %v568
        %v766 = vadd.f32 %v764, %v570
        %v767 = vsel %vm572, %v765, 0.0
        %v768 = vrot.slane %v767, 4
        %v769 = vadd.f32 %v767, %v768
        %v770 = vrot.slane %v769, 2
        %v771 = vadd.f32 %v769, %v770
        %v772 = vrot.slane %v771, 1
        %v773 = vadd.f32 %v771, %v772
        %v774 = vsel %vm572, %v766, 0.0
        %v775 = vrot.slane %v774, 4
        %v776 = vadd.f32 %v774, %v775
        %v777 = vrot.slane %v776, 2
        %v778 = vadd.f32 %v776, %v777
        %v779 = vrot.slane %v778, 1
        %v780 = vadd.f32 %v778, %v779
        %v781 = vmul.f32 %v773, %v593
        %v782 = vmul.f32 %v780, %v593
        %v783 = vsub.f32 %v765, %v781
        %v784 = vsub.f32 %v766, %v782
        %v785 = vmul.f32 %v783, %v783
        %v786 = vmul.f32 %v784, %v784
        %v787 = vsel %vm572, %v785, 0.0
        %v788 = vrot.slane %v787, 4
        %v789 = vadd.f32 %v787, %v788
        %v790 = vrot.slane %v789, 2
        %v791 = vadd.f32 %v789, %v790
        %v792 = vrot.slane %v791, 1
        %v793 = vadd.f32 %v791, %v792
        %v794 = vsel %vm572, %v786, 0.0
        %v795 = vrot.slane %v794, 4
        %v796 = vadd.f32 %v794, %v795
        %v797 = vrot.slane %v796, 2
        %v798 = vadd.f32 %v796, %v797
        %v799 = vrot.slane %v798, 1
        %v800 = vadd.f32 %v798, %v799
        %v801 = vmul.f32 %v793, %v593
        %v802 = vmul.f32 %v800, %v593
        %v803 = vadd.f32 %v801, 1e-05
        %v804 = vadd.f32 %v802, 1e-05
        %v805 = vrsqrt.pop %v803
        %v806 = vmul.f32 %v805, %v803
        %v807 = vmul.f32 %v806, %v805
        %v808 = vmul.f32 0.5, %v807
        %v809 = vsub.f32 1.5, %v808
        %v810 = vmul.f32 %v805, %v809
        %vm811 = vweird.f32 %v803
        %vm812 = vweird.f32 %v805
        %vm813 = vmor %vm811, %vm812
        %v814 = vsel %vm813, %v805, %v810
        %v815 = vrsqrt.pop %v804
        %v816 = vmul.f32 %v815, %v804
        %v817 = vmul.f32 %v816, %v815
        %v818 = vmul.f32 0.5, %v817
        %v819 = vsub.f32 1.5, %v818
        %v820 = vmul.f32 %v815, %v819
        %vm821 = vweird.f32 %v804
        %vm822 = vweird.f32 %v815
        %vm823 = vmor %vm821, %vm822
        %v824 = vsel %vm823, %v815, %v820
        %v825 = vmul.f32 %v783, %v814
        %v826 = vmul.f32 %v784, %v824
        %v827 = vld [vmem:[%s545] sm:$0xff]
        %v828 = vld [vmem:[%s545 + $0x8] sm:$0xff]
        %v829 = vld [vmem:[%s545 + $0x10] sm:$0xff]
        %v830 = vld [vmem:[%s545 + $0x18] sm:$0xff]
        %v831 = vld [vmem:[%s545 + $0x20] sm:$0xff]
        %v832 = vld [vmem:[%s545 + $0x28] sm:$0xff]
        %v833 = vld [vmem:[%s545 + $0x30] sm:$0xff]
        %v834 = vld [vmem:[%s545 + $0x38] sm:$0xff]
        %v835 = vld [vmem:[%s550] sm:$0xff]
        %v836 = vld [vmem:[%s550 + $0x8] sm:$0xff]
        %v837 = vld [vmem:[%s550 + $0x10] sm:$0xff]
        %v838 = vld [vmem:[%s550 + $0x18] sm:$0xff]
        %v839 = vld [vmem:[%s550 + $0x20] sm:$0xff]
        %v840 = vld [vmem:[%s550 + $0x28] sm:$0xff]
        %v841 = vld [vmem:[%s550 + $0x30] sm:$0xff]
        %v842 = vld [vmem:[%s550 + $0x38] sm:$0xff]
        %844 = vset.pattern.permute.xlu0 0
        %845 = vperm.xlu0 %844, %v835
        %v846 = vpop.permute.xlu0 %845
        %849 = vset.pattern.permute.xlu0 0
        %850 = vperm.xlu0 %849, %v836
        %v851 = vpop.permute.xlu0 %850
        %854 = vset.pattern.permute.xlu0 0
        %855 = vperm.xlu0 %854, %v837
        %v856 = vpop.permute.xlu0 %855
        %859 = vset.pattern.permute.xlu0 0
        %860 = vperm.xlu0 %859, %v838
        %v861 = vpop.permute.xlu0 %860
        %864 = vset.pattern.permute.xlu0 0
        %865 = vperm.xlu0 %864, %v839
        %v866 = vpop.permute.xlu0 %865
        %869 = vset.pattern.permute.xlu0 0
        %870 = vperm.xlu0 %869, %v840
        %v871 = vpop.permute.xlu0 %870
        %874 = vset.pattern.permute.xlu0 0
        %875 = vperm.xlu0 %874, %v841
        %v876 = vpop.permute.xlu0 %875
        %879 = vset.pattern.permute.xlu0 0
        %880 = vperm.xlu0 %879, %v842
        %v881 = vpop.permute.xlu0 %880
        %885 = vst [vmem:[#allocation1] ss:$2 sm:$0xff] %v825
        %s886 = scalar_lea.vmem [#allocation1], 1
        %887 = vst [vmem:[%s886] ss:$2 sm:$0xff] %v826
        %v888 = vld.sshfl [vmem:[#allocation1] sm:$0xff pattern:$0x75316420]
        %v891 = vsel %vm732, %v827, 0
        %v894 = vsel %vm732, %v828, 0
        %v897 = vsel %vm732, %v829, 0
        %v900 = vsel %vm732, %v830, 0
        %v903 = vsel %vm732, %v831, 0
        %v906 = vsel %vm732, %v832, 0
        %v909 = vsel %vm732, %v833, 0
        %v912 = vsel %vm732, %v834, 0
        %914 = vmatpush.msra.mxu0 0.0
        %915 = vmatpush.msra.mxu0 0.0
        %916 = vmatpush.msra.mxu0 0.0
        %917 = vmatpush.msra.mxu0 0.0
        %918 = vmatpush.msra.mxu0 0.0
        %919 = vmatpush.msra.mxu0 0.0
        %920 = vmatpush.msra.mxu0 0.0
        %921 = vmatpush.msra.mxu0 0.0
        %922 = vmatpush.msra.mxu0 0.0
        %923 = vmatpush.msra.mxu0 0.0
        %924 = vmatpush.msra.mxu0 0.0
        %925 = vmatpush.msra.mxu0 0.0
        %926 = vmatpush.msra.mxu0 0.0
        %927 = vmatpush.msra.mxu0 0.0
        %928 = vmatpush.msra.mxu0 0.0
        %929 = vmatpush.msra.mxu0 %v888
        %930 = vmatmul.f32.gmra.mxu0 %v891
        %v931 = vpop.f32.mrf.mxu0
        %v932 = vadd.f32 %v846, %v931
        %933 = vmatmul.f32.gmra.mxu0 %v894
        %v934 = vpop.f32.mrf.mxu0
        %v935 = vadd.f32 %v851, %v934
        %936 = vmatmul.f32.gmra.mxu0 %v897
        %v937 = vpop.f32.mrf.mxu0
        %v938 = vadd.f32 %v856, %v937
        %939 = vmatmul.f32.gmra.mxu0 %v900
        %v940 = vpop.f32.mrf.mxu0
        %v941 = vadd.f32 %v861, %v940
        %942 = vmatmul.f32.gmra.mxu0 %v903
        %v943 = vpop.f32.mrf.mxu0
        %v944 = vadd.f32 %v866, %v943
        %945 = vmatmul.f32.gmra.mxu0 %v906
        %v946 = vpop.f32.mrf.mxu0
        %v947 = vadd.f32 %v871, %v946
        %948 = vmatmul.f32.gmra.mxu0 %v909
        %v949 = vpop.f32.mrf.mxu0
        %v950 = vadd.f32 %v876, %v949
        %951 = vmatmul.f32.gmra.mxu0 %v912
        %v952 = vpop.f32.mrf.mxu0
        %v953 = vadd.f32 %v881, %v952
        %954 = vdwg.mxu0
        %v955 = vmul.f32 %v932, 0.5
        %v956 = vmul.f32 %v935, 0.5
        %v957 = vmul.f32 %v938, 0.5
        %v958 = vmul.f32 %v941, 0.5
        %v959 = vmul.f32 %v944, 0.5
        %v960 = vmul.f32 %v947, 0.5
        %v961 = vmul.f32 %v950, 0.5
        %v962 = vmul.f32 %v953, 0.5
        %v963 = vmul.f32 %v932, 0.70710677
        %v964 = vmul.f32 %v935, 0.70710677
        %v965 = vmul.f32 %v938, 0.70710677
        %v966 = vmul.f32 %v941, 0.70710677
        %v967 = vmul.f32 %v944, 0.70710677
        %v968 = vmul.f32 %v947, 0.70710677
        %v969 = vmul.f32 %v950, 0.70710677
        %v970 = vmul.f32 %v953, 0.70710677
        %v971 = vmul.f32 %v963, %v963
        %v972 = vmin.f32 16.0, %v971
        %v973 = vmul.f32 %v972, 2.1237322e-06
        %v974 = vadd.f32 %v973, 0.00028619796
        %v975 = vmul.f32 %v972, %v974
        %v976 = vadd.f32 %v975, 0.0036580483
        %v977 = vmul.f32 %v972, %v976
        %v978 = vadd.f32 %v977, 0.05243302
        %v979 = vmul.f32 %v972, %v978
        %v980 = vadd.f32 %v979, 0.18741608
        %v981 = vmul.f32 %v972, %v980
        %v982 = vadd.f32 %v981, 1.1283791
        %v983 = vmul.f32 %v963, %v982
        %v984 = vmul.f32 %v972, 3.8918573e-05
        %v985 = vadd.f32 %v984, 0.001143296
        %v986 = vmul.f32 %v972, %v985
        %v987 = vadd.f32 %v986, 0.014752088
        %v988 = vmul.f32 %v972, %v987
        %v989 = vadd.f32 %v988, 0.112945676
        %v990 = vmul.f32 %v972, %v989
        %v991 = vadd.f32 %v990, 0.4994258
        %v992 = vmul.f32 %v972, %v991
        %v993 = vadd.f32 %v992, 1.0
        %v994 = vrcp.pop %v993
        %v995 = vmul.f32 %v993, %v994
        %v996 = vsub.f32 1.0, %v995
        %v997 = vmul.f32 %v994, %v996
        %v998 = vadd.f32 %v994, %v997
        %vm999 = vweird.f32 %v993
        %vm1000 = vweird.f32 %v994
        %vm1001 = vmor %vm999, %vm1000
        %v1002 = vsel %vm1001, %v994, %v998
        %v1003 = vand.u32 2147483647, %v993
        %vm1004 = vcmp.eq.f32.partialorder %v1003, 8.507059e+37
        %v1005 = vand.u32 %v993, 2147483648
        %v1006 = vor.u32 1.1754944e-38, %v1005
        %v1007 = vsel %vm1004, %v1006, %v1002
        %v1008 = vmul.f32 %v983, %v1007
        %v1009 = vmin.f32 %v1008, 1.0
        %v1010 = vmax.f32 %v1009, -1.0
        %v1011 = vmul.f32 %v964, %v964
        %v1012 = vmin.f32 16.0, %v1011
        %v1013 = vmul.f32 %v1012, 2.1237322e-06
        %v1014 = vadd.f32 %v1013, 0.00028619796
        %v1015 = vmul.f32 %v1012, %v1014
        %v1016 = vadd.f32 %v1015, 0.0036580483
        %v1017 = vmul.f32 %v1012, %v1016
        %v1018 = vadd.f32 %v1017, 0.05243302
        %v1019 = vmul.f32 %v1012, %v1018
        %v1020 = vadd.f32 %v1019, 0.18741608
        %v1021 = vmul.f32 %v1012, %v1020
        %v1022 = vadd.f32 %v1021, 1.1283791
        %v1023 = vmul.f32 %v964, %v1022
        %v1024 = vmul.f32 %v1012, 3.8918573e-05
        %v1025 = vadd.f32 %v1024, 0.001143296
        %v1026 = vmul.f32 %v1012, %v1025
        %v1027 = vadd.f32 %v1026, 0.014752088
        %v1028 = vmul.f32 %v1012, %v1027
        %v1029 = vadd.f32 %v1028, 0.112945676
        %v1030 = vmul.f32 %v1012, %v1029
        %v1031 = vadd.f32 %v1030, 0.4994258
        %v1032 = vmul.f32 %v1012, %v1031
        %v1033 = vadd.f32 %v1032, 1.0
        %v1034 = vrcp.pop %v1033
        %v1035 = vmul.f32 %v1033, %v1034
        %v1036 = vsub.f32 1.0, %v1035
        %v1037 = vmul.f32 %v1034, %v1036
        %v1038 = vadd.f32 %v1034, %v1037
        %vm1039 = vweird.f32 %v1033
        %vm1040 = vweird.f32 %v1034
        %vm1041 = vmor %vm1039, %vm1040
        %v1042 = vsel %vm1041, %v1034, %v1038
        %v1043 = vand.u32 2147483647, %v1033
        %vm1044 = vcmp.eq.f32.partialorder %v1043, 8.507059e+37
        %v1045 = vand.u32 %v1033, 2147483648
        %v1046 = vor.u32 1.1754944e-38, %v1045
        %v1047 = vsel %vm1044, %v1046, %v1042
        %v1048 = vmul.f32 %v1023, %v1047
        %v1049 = vmin.f32 %v1048, 1.0
        %v1050 = vmax.f32 %v1049, -1.0
        %v1051 = vmul.f32 %v965, %v965
        %v1052 = vmin.f32 16.0, %v1051
        %v1053 = vmul.f32 %v1052, 2.1237322e-06
        %v1054 = vadd.f32 %v1053, 0.00028619796
        %v1055 = vmul.f32 %v1052, %v1054
        %v1056 = vadd.f32 %v1055, 0.0036580483
        %v1057 = vmul.f32 %v1052, %v1056
        %v1058 = vadd.f32 %v1057, 0.05243302
        %v1059 = vmul.f32 %v1052, %v1058
        %v1060 = vadd.f32 %v1059, 0.18741608
        %v1061 = vmul.f32 %v1052, %v1060
        %v1062 = vadd.f32 %v1061, 1.1283791
        %v1063 = vmul.f32 %v965, %v1062
        %v1064 = vmul.f32 %v1052, 3.8918573e-05
        %v1065 = vadd.f32 %v1064, 0.001143296
        %v1066 = vmul.f32 %v1052, %v1065
        %v1067 = vadd.f32 %v1066, 0.014752088
        %v1068 = vmul.f32 %v1052, %v1067
        %v1069 = vadd.f32 %v1068, 0.112945676
        %v1070 = vmul.f32 %v1052, %v1069
        %v1071 = vadd.f32 %v1070, 0.4994258
        %v1072 = vmul.f32 %v1052, %v1071
        %v1073 = vadd.f32 %v1072, 1.0
        %v1074 = vrcp.pop %v1073
        %v1075 = vmul.f32 %v1073, %v1074
        %v1076 = vsub.f32 1.0, %v1075
        %v1077 = vmul.f32 %v1074, %v1076
        %v1078 = vadd.f32 %v1074, %v1077
        %vm1079 = vweird.f32 %v1073
        %vm1080 = vweird.f32 %v1074
        %vm1081 = vmor %vm1079, %vm1080
        %v1082 = vsel %vm1081, %v1074, %v1078
        %v1083 = vand.u32 2147483647, %v1073
        %vm1084 = vcmp.eq.f32.partialorder %v1083, 8.507059e+37
        %v1085 = vand.u32 %v1073, 2147483648
        %v1086 = vor.u32 1.1754944e-38, %v1085
        %v1087 = vsel %vm1084, %v1086, %v1082
        %v1088 = vmul.f32 %v1063, %v1087
        %v1089 = vmin.f32 %v1088, 1.0
        %v1090 = vmax.f32 %v1089, -1.0
        %v1091 = vmul.f32 %v966, %v966
        %v1092 = vmin.f32 16.0, %v1091
        %v1093 = vmul.f32 %v1092, 2.1237322e-06
        %v1094 = vadd.f32 %v1093, 0.00028619796
        %v1095 = vmul.f32 %v1092, %v1094
        %v1096 = vadd.f32 %v1095, 0.0036580483
        %v1097 = vmul.f32 %v1092, %v1096
        %v1098 = vadd.f32 %v1097, 0.05243302
        %v1099 = vmul.f32 %v1092, %v1098
        %v1100 = vadd.f32 %v1099, 0.18741608
        %v1101 = vmul.f32 %v1092, %v1100
        %v1102 = vadd.f32 %v1101, 1.1283791
        %v1103 = vmul.f32 %v966, %v1102
        %v1104 = vmul.f32 %v1092, 3.8918573e-05
        %v1105 = vadd.f32 %v1104, 0.001143296
        %v1106 = vmul.f32 %v1092, %v1105
        %v1107 = vadd.f32 %v1106, 0.014752088
        %v1108 = vmul.f32 %v1092, %v1107
        %v1109 = vadd.f32 %v1108, 0.112945676
        %v1110 = vmul.f32 %v1092, %v1109
        %v1111 = vadd.f32 %v1110, 0.4994258
        %v1112 = vmul.f32 %v1092, %v1111
        %v1113 = vadd.f32 %v1112, 1.0
        %v1114 = vrcp.pop %v1113
        %v1115 = vmul.f32 %v1113, %v1114
        %v1116 = vsub.f32 1.0, %v1115
        %v1117 = vmul.f32 %v1114, %v1116
        %v1118 = vadd.f32 %v1114, %v1117
        %vm1119 = vweird.f32 %v1113
        %vm1120 = vweird.f32 %v1114
        %vm1121 = vmor %vm1119, %vm1120
        %v1122 = vsel %vm1121, %v1114, %v1118
        %v1123 = vand.u32 2147483647, %v1113
        %vm1124 = vcmp.eq.f32.partialorder %v1123, 8.507059e+37
        %v1125 = vand.u32 %v1113, 2147483648
        %v1126 = vor.u32 1.1754944e-38, %v1125
        %v1127 = vsel %vm1124, %v1126, %v1122
        %v1128 = vmul.f32 %v1103, %v1127
        %v1129 = vmin.f32 %v1128, 1.0
        %v1130 = vmax.f32 %v1129, -1.0
        %v1131 = vmul.f32 %v967, %v967
        %v1132 = vmin.f32 16.0, %v1131
        %v1133 = vmul.f32 %v1132, 2.1237322e-06
        %v1134 = vadd.f32 %v1133, 0.00028619796
        %v1135 = vmul.f32 %v1132, %v1134
        %v1136 = vadd.f32 %v1135, 0.0036580483
        %v1137 = vmul.f32 %v1132, %v1136
        %v1138 = vadd.f32 %v1137, 0.05243302
        %v1139 = vmul.f32 %v1132, %v1138
        %v1140 = vadd.f32 %v1139, 0.18741608
        %v1141 = vmul.f32 %v1132, %v1140
        %v1142 = vadd.f32 %v1141, 1.1283791
        %v1143 = vmul.f32 %v967, %v1142
        %v1144 = vmul.f32 %v1132, 3.8918573e-05
        %v1145 = vadd.f32 %v1144, 0.001143296
        %v1146 = vmul.f32 %v1132, %v1145
        %v1147 = vadd.f32 %v1146, 0.014752088
        %v1148 = vmul.f32 %v1132, %v1147
        %v1149 = vadd.f32 %v1148, 0.112945676
        %v1150 = vmul.f32 %v1132, %v1149
        %v1151 = vadd.f32 %v1150, 0.4994258
        %v1152 = vmul.f32 %v1132, %v1151
        %v1153 = vadd.f32 %v1152, 1.0
        %v1154 = vrcp.pop %v1153
        %v1155 = vmul.f32 %v1153, %v1154
        %v1156 = vsub.f32 1.0, %v1155
        %v1157 = vmul.f32 %v1154, %v1156
        %v1158 = vadd.f32 %v1154, %v1157
        %vm1159 = vweird.f32 %v1153
        %vm1160 = vweird.f32 %v1154
        %vm1161 = vmor %vm1159, %vm1160
        %v1162 = vsel %vm1161, %v1154, %v1158
        %v1163 = vand.u32 2147483647, %v1153
        %vm1164 = vcmp.eq.f32.partialorder %v1163, 8.507059e+37
        %v1165 = vand.u32 %v1153, 2147483648
        %v1166 = vor.u32 1.1754944e-38, %v1165
        %v1167 = vsel %vm1164, %v1166, %v1162
        %v1168 = vmul.f32 %v1143, %v1167
        %v1169 = vmin.f32 %v1168, 1.0
        %v1170 = vmax.f32 %v1169, -1.0
        %v1171 = vmul.f32 %v968, %v968
        %v1172 = vmin.f32 16.0, %v1171
        %v1173 = vmul.f32 %v1172, 2.1237322e-06
        %v1174 = vadd.f32 %v1173, 0.00028619796
        %v1175 = vmul.f32 %v1172, %v1174
        %v1176 = vadd.f32 %v1175, 0.0036580483
        %v1177 = vmul.f32 %v1172, %v1176
        %v1178 = vadd.f32 %v1177, 0.05243302
        %v1179 = vmul.f32 %v1172, %v1178
        %v1180 = vadd.f32 %v1179, 0.18741608
        %v1181 = vmul.f32 %v1172, %v1180
        %v1182 = vadd.f32 %v1181, 1.1283791
        %v1183 = vmul.f32 %v968, %v1182
        %v1184 = vmul.f32 %v1172, 3.8918573e-05
        %v1185 = vadd.f32 %v1184, 0.001143296
        %v1186 = vmul.f32 %v1172, %v1185
        %v1187 = vadd.f32 %v1186, 0.014752088
        %v1188 = vmul.f32 %v1172, %v1187
        %v1189 = vadd.f32 %v1188, 0.112945676
        %v1190 = vmul.f32 %v1172, %v1189
        %v1191 = vadd.f32 %v1190, 0.4994258
        %v1192 = vmul.f32 %v1172, %v1191
        %v1193 = vadd.f32 %v1192, 1.0
        %v1194 = vrcp.pop %v1193
        %v1195 = vmul.f32 %v1193, %v1194
        %v1196 = vsub.f32 1.0, %v1195
        %v1197 = vmul.f32 %v1194, %v1196
        %v1198 = vadd.f32 %v1194, %v1197
        %vm1199 = vweird.f32 %v1193
        %vm1200 = vweird.f32 %v1194
        %vm1201 = vmor %vm1199, %vm1200
        %v1202 = vsel %vm1201, %v1194, %v1198
        %v1203 = vand.u32 2147483647, %v1193
        %vm1204 = vcmp.eq.f32.partialorder %v1203, 8.507059e+37
        %v1205 = vand.u32 %v1193, 2147483648
        %v1206 = vor.u32 1.1754944e-38, %v1205
        %v1207 = vsel %vm1204, %v1206, %v1202
        %v1208 = vmul.f32 %v1183, %v1207
        %v1209 = vmin.f32 %v1208, 1.0
        %v1210 = vmax.f32 %v1209, -1.0
        %v1211 = vmul.f32 %v969, %v969
        %v1212 = vmin.f32 16.0, %v1211
        %v1213 = vmul.f32 %v1212, 2.1237322e-06
        %v1214 = vadd.f32 %v1213, 0.00028619796
        %v1215 = vmul.f32 %v1212, %v1214
        %v1216 = vadd.f32 %v1215, 0.0036580483
        %v1217 = vmul.f32 %v1212, %v1216
        %v1218 = vadd.f32 %v1217, 0.05243302
        %v1219 = vmul.f32 %v1212, %v1218
        %v1220 = vadd.f32 %v1219, 0.18741608
        %v1221 = vmul.f32 %v1212, %v1220
        %v1222 = vadd.f32 %v1221, 1.1283791
        %v1223 = vmul.f32 %v969, %v1222
        %v1224 = vmul.f32 %v1212, 3.8918573e-05
        %v1225 = vadd.f32 %v1224, 0.001143296
        %v1226 = vmul.f32 %v1212, %v1225
        %v1227 = vadd.f32 %v1226, 0.014752088
        %v1228 = vmul.f32 %v1212, %v1227
        %v1229 = vadd.f32 %v1228, 0.112945676
        %v1230 = vmul.f32 %v1212, %v1229
        %v1231 = vadd.f32 %v1230, 0.4994258
        %v1232 = vmul.f32 %v1212, %v1231
        %v1233 = vadd.f32 %v1232, 1.0
        %v1234 = vrcp.pop %v1233
        %v1235 = vmul.f32 %v1233, %v1234
        %v1236 = vsub.f32 1.0, %v1235
        %v1237 = vmul.f32 %v1234, %v1236
        %v1238 = vadd.f32 %v1234, %v1237
        %vm1239 = vweird.f32 %v1233
        %vm1240 = vweird.f32 %v1234
        %vm1241 = vmor %vm1239, %vm1240
        %v1242 = vsel %vm1241, %v1234, %v1238
        %v1243 = vand.u32 2147483647, %v1233
        %vm1244 = vcmp.eq.f32.partialorder %v1243, 8.507059e+37
        %v1245 = vand.u32 %v1233, 2147483648
        %v1246 = vor.u32 1.1754944e-38, %v1245
        %v1247 = vsel %vm1244, %v1246, %v1242
        %v1248 = vmul.f32 %v1223, %v1247
        %v1249 = vmin.f32 %v1248, 1.0
        %v1250 = vmax.f32 %v1249, -1.0
        %v1251 = vmul.f32 %v970, %v970
        %v1252 = vmin.f32 16.0, %v1251
        %v1253 = vmul.f32 %v1252, 2.1237322e-06
        %v1254 = vadd.f32 %v1253, 0.00028619796
        %v1255 = vmul.f32 %v1252, %v1254
        %v1256 = vadd.f32 %v1255, 0.0036580483
        %v1257 = vmul.f32 %v1252, %v1256
        %v1258 = vadd.f32 %v1257, 0.05243302
        %v1259 = vmul.f32 %v1252, %v1258
        %v1260 = vadd.f32 %v1259, 0.18741608
        %v1261 = vmul.f32 %v1252, %v1260
        %v1262 = vadd.f32 %v1261, 1.1283791
        %v1263 = vmul.f32 %v970, %v1262
        %v1264 = vmul.f32 %v1252, 3.8918573e-05
        %v1265 = vadd.f32 %v1264, 0.001143296
        %v1266 = vmul.f32 %v1252, %v1265
        %v1267 = vadd.f32 %v1266, 0.014752088
        %v1268 = vmul.f32 %v1252, %v1267
        %v1269 = vadd.f32 %v1268, 0.112945676
        %v1270 = vmul.f32 %v1252, %v1269
        %v1271 = vadd.f32 %v1270, 0.4994258
        %v1272 = vmul.f32 %v1252, %v1271
        %v1273 = vadd.f32 %v1272, 1.0
        %v1274 = vrcp.pop %v1273
        %v1275 = vmul.f32 %v1273, %v1274
        %v1276 = vsub.f32 1.0, %v1275
        %v1277 = vmul.f32 %v1274, %v1276
        %v1278 = vadd.f32 %v1274, %v1277
        %vm1279 = vweird.f32 %v1273
        %vm1280 = vweird.f32 %v1274
        %vm1281 = vmor %vm1279, %vm1280
        %v1282 = vsel %vm1281, %v1274, %v1278
        %v1283 = vand.u32 2147483647, %v1273
        %vm1284 = vcmp.eq.f32.partialorder %v1283, 8.507059e+37
        %v1285 = vand.u32 %v1273, 2147483648
        %v1286 = vor.u32 1.1754944e-38, %v1285
        %v1287 = vsel %vm1284, %v1286, %v1282
        %v1288 = vmul.f32 %v1263, %v1287
        %v1289 = vmin.f32 %v1288, 1.0
        %v1290 = vmax.f32 %v1289, -1.0
        %v1291 = vadd.f32 %v1010, 1.0
        %v1292 = vadd.f32 %v1050, 1.0
        %v1293 = vadd.f32 %v1090, 1.0
        %v1294 = vadd.f32 %v1130, 1.0
        %v1295 = vadd.f32 %v1170, 1.0
        %v1296 = vadd.f32 %v1210, 1.0
        %v1297 = vadd.f32 %v1250, 1.0
        %v1298 = vadd.f32 %v1290, 1.0
        %v1299 = vmul.f32 %v955, %v1291
        %v1300 = vmul.f32 %v956, %v1292
        %v1301 = vmul.f32 %v957, %v1293
        %v1302 = vmul.f32 %v958, %v1294
        %v1303 = vmul.f32 %v959, %v1295
        %v1304 = vmul.f32 %v960, %v1296
        %v1305 = vmul.f32 %v961, %v1297
        %v1306 = vmul.f32 %v962, %v1298
        %v1307 = vld [vmem:[%s554] sm:$0xff]
        %v1308 = vld [vmem:[%s558] sm:$0xff]
        %1310 = vset.pattern.permute.xlu0 0
        %1311 = vperm.xlu0 %1310, %v1308
        %v1312 = vpop.permute.xlu0 %1311
        %vm1314 = vcmask 523264
        %v1316 = vsel %vm1314, %v1307, 0
        %1318 = vmatpush.msra.mxu0 0.0
        %1319 = vmatpush.msra.mxu0 0.0
        %1320 = vmatpush.msra.mxu0 0.0
        %1321 = vmatpush.msra.mxu0 0.0
        %1322 = vmatpush.msra.mxu0 0.0
        %1323 = vmatpush.msra.mxu0 0.0
        %1324 = vmatpush.msra.mxu0 0.0
        %1325 = vmatpush.msra.mxu0 0.0
        %1326 = vmatpush.msra.mxu0 %v1306
        %1327 = vmatpush.msra.mxu0 %v1305
        %1328 = vmatpush.msra.mxu0 %v1304
        %1329 = vmatpush.msra.mxu0 %v1303
        %1330 = vmatpush.msra.mxu0 %v1302
        %1331 = vmatpush.msra.mxu0 %v1301
        %1332 = vmatpush.msra.mxu0 %v1300
        %1333 = vmatpush.msra.mxu0 %v1299
        %1334 = vmatmul.f32.gmra.mxu0 %v1316
        %v1335 = vpop.f32.mrf.mxu0
        %v1336 = vadd.f32 %v1312, %v1335
        %1337 = vdwg.mxu0
        %1340 = vst [vmem:[#allocation1] ss:$2 sm:$0xff] %v765
        %s1341 = scalar_lea.vmem [#allocation1], 1
        %1342 = vst [vmem:[%s1341] ss:$2 sm:$0xff] %v766
        %v1343 = vld.sshfl [vmem:[#allocation1] sm:$0xff pattern:$0x75316420]
        %v1345 = vadd.f32 %v1336, %v1343
        %1346 = vst.msk [vmem:[#allocation2] sm:$0xff] %vm664, %v1345
        %p1347 = scmp.eq.s32.totalorder %s29, 1
        // Predicated region
        $region73: #{tpu_custom_call.1} parent=67 // pred_check
          %p1348 = pneg %p1347
        $region74: #{tpu_custom_call.1} parent=67 // pred_check_branch
          %1350 = sbr.rel (%p1348) target = $region76
        $region75: #{tpu_custom_call.1} parent=67 // pred_region
          %v1352 = vrot.slane %v1345, 4
          %v1354 = vsel %vm572, %v1345, 0.0
          %v1355 = vrot.slane %v1354, 4
          %v1356 = vadd.f32 %v1354, %v1355
          %v1357 = vrot.slane %v1356, 2
          %v1358 = vadd.f32 %v1356, %v1357
          %v1359 = vrot.slane %v1358, 1
          %v1360 = vadd.f32 %v1358, %v1359
          %v1361 = vsel %vm572, %v1352, 0.0
          %v1362 = vrot.slane %v1361, 4
          %v1363 = vadd.f32 %v1361, %v1362
          %v1364 = vrot.slane %v1363, 2
          %v1365 = vadd.f32 %v1363, %v1364
          %v1366 = vrot.slane %v1365, 1
          %v1367 = vadd.f32 %v1365, %v1366
          %v1368 = vmul.f32 %v1360, %v593
          %v1369 = vmul.f32 %v1367, %v593
          %v1370 = vsub.f32 %v1345, %v1368
          %v1371 = vsub.f32 %v1352, %v1369
          %v1372 = vmul.f32 %v1370, %v1370
          %v1373 = vmul.f32 %v1371, %v1371
          %v1374 = vsel %vm572, %v1372, 0.0
          %v1375 = vrot.slane %v1374, 4
          %v1376 = vadd.f32 %v1374, %v1375
          %v1377 = vrot.slane %v1376, 2
          %v1378 = vadd.f32 %v1376, %v1377
          %v1379 = vrot.slane %v1378, 1
          %v1380 = vadd.f32 %v1378, %v1379
          %v1381 = vsel %vm572, %v1373, 0.0
          %v1382 = vrot.slane %v1381, 4
          %v1383 = vadd.f32 %v1381, %v1382
          %v1384 = vrot.slane %v1383, 2
          %v1385 = vadd.f32 %v1383, %v1384
          %v1386 = vrot.slane %v1385, 1
          %v1387 = vadd.f32 %v1385, %v1386
          %v1388 = vmul.f32 %v1380, %v593
          %v1389 = vmul.f32 %v1387, %v593
          %v1390 = vadd.f32 %v1388, 1e-05
          %v1391 = vadd.f32 %v1389, 1e-05
          %v1392 = vrsqrt.pop %v1390
          %v1393 = vmul.f32 %v1392, %v1390
          %v1394 = vmul.f32 %v1393, %v1392
          %v1395 = vmul.f32 0.5, %v1394
          %v1396 = vsub.f32 1.5, %v1395
          %v1397 = vmul.f32 %v1392, %v1396
          %vm1398 = vweird.f32 %v1390
          %vm1399 = vweird.f32 %v1392
          %vm1400 = vmor %vm1398, %vm1399
          %v1401 = vsel %vm1400, %v1392, %v1397
          %v1402 = vrsqrt.pop %v1391
          %v1403 = vmul.f32 %v1402, %v1391
          %v1404 = vmul.f32 %v1403, %v1402
          %v1405 = vmul.f32 0.5, %v1404
          %v1406 = vsub.f32 1.5, %v1405
          %v1407 = vmul.f32 %v1402, %v1406
          %vm1408 = vweird.f32 %v1391
          %vm1409 = vweird.f32 %v1402
          %vm1410 = vmor %vm1408, %vm1409
          %v1411 = vsel %vm1410, %v1402, %v1407
          %v1412 = vmul.f32 %v1370, %v1401
          %v1413 = vmul.f32 %v1371, %v1411
          %v1414 = vld [vmem:[%s10] sm:$0xf]
          %1416 = vset.pattern.permute.xlu0 0
          %1417 = vperm.xlu0 %1416, %v1414
          %v1418 = vpop.permute.xlu0 %1417
          %v1420 = vmul.f32 %v1412, %v1418
          %v1421 = vmul.f32 %v1413, %v1418
          %v1422 = vld [vmem:[%s11] sm:$0xf]
          %1424 = vset.pattern.permute.xlu0 0
          %1425 = vperm.xlu0 %1424, %v1422
          %v1426 = vpop.permute.xlu0 %1425
          %v1428 = vadd.f32 %v1420, %v1426
          %v1429 = vadd.f32 %v1421, %v1426
          %1432 = vst [vmem:[#allocation1] ss:$2 sm:$0xff] %v1428
          %s1433 = scalar_lea.vmem [#allocation1], 1
          %1434 = vst [vmem:[%s1433] ss:$2 sm:$0xff] %v1429
          %v1435 = vld.sshfl [vmem:[#allocation1] sm:$0xff pattern:$0x75316420]
          %1437 = vst.msk [vmem:[#allocation3] sm:$0xff] %vm664, %v1435
        $region76: #{tpu_custom_call.1} parent=67 // pred_fallthru
          _
        // Predicated region
        $region77: #{tpu_custom_call.1} parent=67 // pred_check
          %p1438 = pneg %p351
        $region78: #{tpu_custom_call.1} parent=67 // pred_check_branch
          %1440 = sbr.rel (%p1438) target = $region80
        $region79: #{tpu_custom_call.1} parent=67 // pred_region
          %1442 = vsyncadd [#allocation4], 0
          %s1443 = smul.addr %s28, 8
          %s1444 = scalar_lea.hbm %s12, %s1443
          %s1446 = sshll.u32 [#allocation3], 4
          %s1447 = int_to_ptr.vmem [resolvable:$true] %s1446
          %s1448 = sshll.u32 %s1444, 4
          %s1449 = int_to_ptr.hbm [resolvable:$true] %s1448
          %1451 = dma.vmem_to_hbm [thread:$0]  %s1447, 128, %s1449, [#allocation4]
        $region80: #{tpu_custom_call.1} parent=67 // pred_fallthru
          _
        // Predicated region
        $region81: #{tpu_custom_call.1} parent=67 // pred_check
          %p1452 = pneg %p351
        $region82: #{tpu_custom_call.1} parent=67 // pred_check_branch
          %1454 = sbr.rel (%p1452) target = $region84
        $region83: #{tpu_custom_call.1} parent=67 // pred_region
          %1456 = dma.done [#allocation4], 128
        $region84: #{tpu_custom_call.1} parent=67 // pred_fallthru
          _
      $region68: #{tpu_custom_call.1} parent=5 // pred_fallthru
        _
      %p1457 = scmp.le.s32.totalorder 2, %s19
      // Predicated region
      $region85: #{tpu_custom_call.1} parent=5 // pred_check
        %p1458 = pneg %p1457
      $region86: #{tpu_custom_call.1} parent=5 // pred_check_branch
        %1460 = sbr.rel (%p1458) target = $region88
      $region87: #{tpu_custom_call.1} parent=5 // pred_region
        %s1461 = ssub.s32 %s19, 2
      $region88: #{tpu_custom_call.1} parent=5 // pred_fallthru
        _
    $region6: #{tpu_custom_call.1} parent=1 // loop_footer
      %s23 = sadd.s32 1, %s19
    $region7: #{tpu_custom_call.1} parent=1 // loop_footer_branch
      %18 = sbr.rel target = $region3
    $region8: #{tpu_custom_call.1} parent=1 // loop_exit
      _
    %1462 = vsyncpa [#allocation4], 1
    %s1463 = scalar_lea.sflag [#allocation4], 1
    %1464 = vsyncpa %s1463, 1

</llo_original>
